<compile_context>
chip_gen: v7x
topology: tpu7x:2x2x1
jax: 0.10.0
libtpu: 0.0.40
codegen_flags: <defaults>
</compile_context>

<pallas_src>
import functools

import jax
import jax.numpy as jnp
from jax.experimental import pallas as pl
from jax.experimental.pallas import tpu as pltpu

INPUT_BITS = 256
LATENT_DIM = 100
LATENT_PAD = 128   # latent dim lane-padded to a full 128-lane width (in-kernel)
HIDDEN = 512


def _round_up(x, m):
    return pl.cdiv(x, m) * m


def _has_bf16_vpu():
    """True on chips with native bf16 VALU (v6e / v7x); False on v5e and older."""
    try:
        kind = jax.devices()[0].device_kind.lower()
    except Exception:
        return True
    return not any(old in kind for old in ("v2", "v3", "v4", "v5"))


def generator_kernel(z_ref, w1_ref, b1_ref, w2_ref, b2_ref, w3_ref, b3_ref,
                     o_ref, zpad_ref, *, act_dtype):
    # In-kernel cast f32 -> bf16 and lane-pad 100 -> 128 into a VMEM scratch.
    # (w1 rows 100..127 are zero, but the pad lanes are still explicitly zeroed
    #  every step so stale VMEM NaN/Inf bits can never poison the accumulation,
    #  and so the kernel stays correct when the grid is sharded across cores.)
    zpad_ref[:, :LATENT_DIM] = z_ref[...].astype(jnp.bfloat16)
    zpad_ref[:, LATENT_DIM:] = jnp.zeros(
        (zpad_ref.shape[0], LATENT_PAD - LATENT_DIM), jnp.bfloat16)

    def dense_relu(x, w_ref, b_ref):
        # MXU matmul with f32 accumulate; bias-add + ReLU in act_dtype
        # (bf16 on v6e/v7x, f32 on v5e); result bf16 for the next MXU pass.
        h = jnp.dot(x, w_ref[...], preferred_element_type=jnp.float32)
        h = h.astype(act_dtype) + b_ref[...].astype(act_dtype)
        return jnp.maximum(h, 0).astype(jnp.bfloat16)

    h1 = dense_relu(zpad_ref[...], w1_ref, b1_ref)
    h2 = dense_relu(h1, w2_ref, b2_ref)
    # Final layer: f32 bias-add + tanh; output last dim 256 -> unmasked stores.
    h3 = jnp.dot(h2, w3_ref[...], preferred_element_type=jnp.float32)
    o_ref[...] = jnp.tanh(h3 + b3_ref[...]).astype(o_ref.dtype)


def prepare_params(params):
    """Pack f32 (in, out) params into kernel-ready form: zero-pad w1's K dim to
    128 and cast weights to bf16; biases stay f32 with shape (1, out)."""
    w1, b1, w2, b2, w3, b3 = params
    w1p = jnp.zeros((LATENT_PAD, HIDDEN), jnp.float32).at[:LATENT_DIM, :].set(w1)
    return (
        w1p.astype(jnp.bfloat16), b1.astype(jnp.float32),
        w2.astype(jnp.bfloat16), b2.astype(jnp.float32),
        w3.astype(jnp.bfloat16), b3.astype(jnp.float32),
    )


def generator_forward(z, kernel_params, *, block_b=1024, out_dtype=jnp.float32,
                      bf16_elementwise=None):
    """z: (B, LATENT_DIM) float32 -> (B, INPUT_BITS) out_dtype.

    kernel_params must come from `prepare_params`.  out_dtype=jnp.bfloat16
    halves the output HBM write (useful on v6e); the default f32 matches the
    PyTorch module.
    """
    w1, b1, w2, b2, w3, b3 = kernel_params
    B = z.shape[0]

    # Batch tile: multiple of 8 sublanes; big enough to amortize per-grid-step
    # pipeline overhead, yet chosen so large batches get >= 2 grid steps
    # (v7x megacore sharding of the "parallel" axis).  Capped at block_b
    # (default 1024) to stay inside v5e's 16 MiB default scoped VMEM.
    tb = min(int(block_b), _round_up(pl.cdiv(B, 2), 8))
    TB = max(8, (tb // 8) * 8)
    Bp = _round_up(B, TB)

    # Only the batch dim is padded in the wrapper (single jnp.pad, only when
    # ragged); the latent cast/pad happens inside the kernel.
    zp = jnp.pad(z, ((0, Bp - B), (0, 0))) if Bp != B else z

    if bf16_elementwise is None:
        bf16_elementwise = _has_bf16_vpu()
    act_dtype = jnp.bfloat16 if bf16_elementwise else jnp.float32

    out = pl.pallas_call(
        functools.partial(generator_kernel, act_dtype=act_dtype),
        out_shape=jax.ShapeDtypeStruct((Bp, INPUT_BITS), out_dtype),
        grid=(Bp // TB,),
        in_specs=[
            # z tile marches along the batch grid (pipelined / double-buffered);
            # full last dim (100) is a legal block extent.
            pl.BlockSpec((TB, LATENT_DIM), lambda i: (i, 0)),
            # Weights & biases: constant block index -> DMA'd once, VMEM-resident.
            pl.BlockSpec((LATENT_PAD, HIDDEN), lambda i: (0, 0)),
            pl.BlockSpec((1, HIDDEN), lambda i: (0, 0)),
            pl.BlockSpec((HIDDEN, HIDDEN), lambda i: (0, 0)),
            pl.BlockSpec((1, HIDDEN), lambda i: (0, 0)),
            pl.BlockSpec((HIDDEN, INPUT_BITS), lambda i: (0, 0)),
            pl.BlockSpec((1, INPUT_BITS), lambda i: (0, 0)),
        ],
        out_specs=pl.BlockSpec((TB, INPUT_BITS), lambda i: (i, 0)),
        scratch_shapes=[pltpu.VMEM((TB, LATENT_PAD), jnp.bfloat16)],
        compiler_params=pltpu.CompilerParams(
            dimension_semantics=("parallel",),  # megacore batch sharding on v7x
        ),
    )(zp, w1, b1, w2, b2, w3, b3)
    return out[:B] if Bp != B else out


def init_params(key):
    """Deterministic init mimicking nn.Linear default (uniform +/- 1/sqrt(fan_in)).

    Weights stored (in_features, out_features) in f32; biases (1, out_features).
    """
    ks = jax.random.split(key, 6)

    def linear(kw, kb, fan_in, fan_out):
        bound = 1.0 / jnp.sqrt(jnp.float32(fan_in))
        w = jax.random.uniform(kw, (fan_in, fan_out), jnp.float32, -bound, bound)
        b = jax.random.uniform(kb, (1, fan_out), jnp.float32, -bound, bound)
        return w, b

    w1, b1 = linear(ks[0], ks[1], LATENT_DIM, HIDDEN)
    w2, b2 = linear(ks[2], ks[3], HIDDEN, HIDDEN)
    w3, b3 = linear(ks[4], ks[5], HIDDEN, INPUT_BITS)
    return (w1, b1, w2, b2, w3, b3)


def reference_forward(z, params):
    """Pure-f32 JAX reference (matches the PyTorch module semantics)."""
    w1, b1, w2, b2, w3, b3 = params
    h1 = jnp.maximum(z @ w1 + b1, 0.0)
    h2 = jnp.maximum(h1 @ w2 + b2, 0.0)
    return jnp.tanh(h2 @ w3 + b3)


if __name__ == "__main__":
    key = jax.random.PRNGKey(0)
    k_params, k_z1, k_z2 = jax.random.split(key, 3)

    params = init_params(k_params)
    kparams = prepare_params(params)

    # Small smoke test: batch=8, single grid step.
    batch = 8
    z = jax.random.normal(k_z1, (batch, LATENT_DIM), jnp.float32)
    out = jax.block_until_ready(generator_forward(z, kparams))
    ref = reference_forward(z, params)
    assert out.shape == (batch, INPUT_BITS), out.shape
    # bf16 matmuls vs f32 reference -> relaxed tolerance (tanh output in [-1, 1]).
    assert jnp.allclose(out, ref, atol=2e-2, rtol=0.0), "mismatch vs JAX reference"

    # Exercise the multi-step pipelined path (grid > 1, ragged batch padding).
    batch2 = 40
    z2 = jax.random.normal(k_z2, (batch2, LATENT_DIM), jnp.float32)
    out2 = jax.block_until_ready(generator_forward(z2, kparams, block_b=16))
    ref2 = reference_forward(z2, params)
    assert out2.shape == (batch2, INPUT_BITS), out2.shape
    assert jnp.allclose(out2, ref2, atol=2e-2, rtol=0.0), \
        "mismatch vs JAX reference (grid>1)"

    print("KERNEL_OK")
</pallas_src>

<mosaic_0001>
module attributes {stable_mosaic.version = 11 : i64} {
  func.func @generator_kernel(%arg0: i32, %arg1: memref<8x100xf32, #tpu.memory_space<vmem>>, %arg2: memref<128x512xbf16, #tpu.memory_space<vmem>>, %arg3: memref<1x512xf32, #tpu.memory_space<vmem>>, %arg4: memref<512x512xbf16, #tpu.memory_space<vmem>>, %arg5: memref<1x512xf32, #tpu.memory_space<vmem>>, %arg6: memref<512x256xbf16, #tpu.memory_space<vmem>>, %arg7: memref<1x256xf32, #tpu.memory_space<vmem>>, %arg8: memref<8x256xf32, #tpu.memory_space<vmem>>, %arg9: memref<8x128xbf16, #tpu.memory_space<vmem>>) attributes {dimension_semantics = [#tpu.dimension_semantics<parallel>], iteration_bounds = array<i64: 1>, scalar_prefetch = 0 : i64, scratch_operands = 1 : i64, tpu.core_type = #tpu.core_type<tc>, window_params = [{transform_indices = @transform_0, window_bounds = array<i64: 8, 100>}, {pipeline_mode = #tpu.pipeline_mode<synchronous>, transform_indices = @transform_1, window_bounds = array<i64: 128, 512>}, {pipeline_mode = #tpu.pipeline_mode<synchronous>, transform_indices = @transform_2, window_bounds = array<i64: 1, 512>}, {pipeline_mode = #tpu.pipeline_mode<synchronous>, transform_indices = @transform_3, window_bounds = array<i64: 512, 512>}, {pipeline_mode = #tpu.pipeline_mode<synchronous>, transform_indices = @transform_4, window_bounds = array<i64: 1, 512>}, {pipeline_mode = #tpu.pipeline_mode<synchronous>, transform_indices = @transform_5, window_bounds = array<i64: 512, 256>}, {pipeline_mode = #tpu.pipeline_mode<synchronous>, transform_indices = @transform_6, window_bounds = array<i64: 1, 256>}, {transform_indices = @transform_7, window_bounds = array<i64: 8, 256>}]} {
    %c0 = arith.constant 0 : index
    %c0_0 = arith.constant 0 : index
    %0 = vector.load %arg1[%c0, %c0_0] : memref<8x100xf32, #tpu.memory_space<vmem>>, vector<8x100xf32>
    %1 = arith.truncf %0 : vector<8x100xf32> to vector<8x100xbf16>
    %c0_1 = arith.constant 0 : index
    %c0_2 = arith.constant 0 : index
    %2 = vector.load %arg9[%c0_1, %c0_2] : memref<8x128xbf16, #tpu.memory_space<vmem>>, vector<8x100xbf16>
    tpu.vector_store %arg9[%c0_1, %c0_2], %1 {strides = array<i32>} : memref<8x128xbf16, #tpu.memory_space<vmem>>, vector<8x100xbf16>,
    %cst = arith.constant 0.000000e+00 : bf16
    %3 = vector.broadcast %cst : bf16 to vector<8x28xbf16>
    %c0_3 = arith.constant 0 : index
    %c100 = arith.constant 100 : index
    %4 = vector.load %arg9[%c0_3, %c100] : memref<8x128xbf16, #tpu.memory_space<vmem>>, vector<8x28xbf16>
    tpu.vector_store %arg9[%c0_3, %c100], %3 {strides = array<i32>} : memref<8x128xbf16, #tpu.memory_space<vmem>>, vector<8x28xbf16>,
    %c0_4 = arith.constant 0 : index
    %c0_5 = arith.constant 0 : index
    %5 = vector.load %arg9[%c0_4, %c0_5] : memref<8x128xbf16, #tpu.memory_space<vmem>>, vector<8x128xbf16>
    %c0_6 = arith.constant 0 : index
    %c0_7 = arith.constant 0 : index
    %6 = vector.load %arg2[%c0_6, %c0_7] : memref<128x512xbf16, #tpu.memory_space<vmem>>, vector<128x512xbf16>
    %cst_8 = arith.constant dense<0.000000e+00> : vector<8x512xf32>
    %7 = tpu.matmul %5, %6, %cst_8 {dimension_numbers = #tpu.dot_dimension_numbers<[1], [0], [0], [1], [0, 0, 1, 1], [], []>} : vector<8x128xbf16>, vector<128x512xbf16>, vector<8x512xf32> -> vector<8x512xf32>
    %8 = arith.truncf %7 : vector<8x512xf32> to vector<8x512xbf16>
    %c0_9 = arith.constant 0 : index
    %c0_10 = arith.constant 0 : index
    %9 = vector.load %arg3[%c0_9, %c0_10] : memref<1x512xf32, #tpu.memory_space<vmem>>, vector<1x512xf32>
    %10 = arith.truncf %9 : vector<1x512xf32> to vector<1x512xbf16>
    %11 = vector.broadcast %10 : vector<1x512xbf16> to vector<8x512xbf16>
    %12 = arith.addf %8, %11 : vector<8x512xbf16>
    %cst_11 = arith.constant 0.000000e+00 : bf16
    %13 = vector.broadcast %cst_11 : bf16 to vector<8x512xbf16>
    %14 = arith.maximumf %12, %13 : vector<8x512xbf16>
    %c0_12 = arith.constant 0 : index
    %c0_13 = arith.constant 0 : index
    %15 = vector.load %arg4[%c0_12, %c0_13] : memref<512x512xbf16, #tpu.memory_space<vmem>>, vector<512x512xbf16>
    %cst_14 = arith.constant dense<0.000000e+00> : vector<8x512xf32>
    %16 = tpu.matmul %14, %15, %cst_14 {dimension_numbers = #tpu.dot_dimension_numbers<[1], [0], [0], [1], [0, 0, 1, 1], [], []>} : vector<8x512xbf16>, vector<512x512xbf16>, vector<8x512xf32> -> vector<8x512xf32>
    %17 = arith.truncf %16 : vector<8x512xf32> to vector<8x512xbf16>
    %c0_15 = arith.constant 0 : index
    %c0_16 = arith.constant 0 : index
    %18 = vector.load %arg5[%c0_15, %c0_16] : memref<1x512xf32, #tpu.memory_space<vmem>>, vector<1x512xf32>
    %19 = arith.truncf %18 : vector<1x512xf32> to vector<1x512xbf16>
    %20 = vector.broadcast %19 : vector<1x512xbf16> to vector<8x512xbf16>
    %21 = arith.addf %17, %20 : vector<8x512xbf16>
    %cst_17 = arith.constant 0.000000e+00 : bf16
    %22 = vector.broadcast %cst_17 : bf16 to vector<8x512xbf16>
    %23 = arith.maximumf %21, %22 : vector<8x512xbf16>
    %c0_18 = arith.constant 0 : index
    %c0_19 = arith.constant 0 : index
    %24 = vector.load %arg6[%c0_18, %c0_19] : memref<512x256xbf16, #tpu.memory_space<vmem>>, vector<512x256xbf16>
    %cst_20 = arith.constant dense<0.000000e+00> : vector<8x256xf32>
    %25 = tpu.matmul %23, %24, %cst_20 {dimension_numbers = #tpu.dot_dimension_numbers<[1], [0], [0], [1], [0, 0, 1, 1], [], []>} : vector<8x512xbf16>, vector<512x256xbf16>, vector<8x256xf32> -> vector<8x256xf32>
    %c0_21 = arith.constant 0 : index
    %c0_22 = arith.constant 0 : index
    %26 = vector.load %arg7[%c0_21, %c0_22] : memref<1x256xf32, #tpu.memory_space<vmem>>, vector<1x256xf32>
    %27 = vector.broadcast %26 : vector<1x256xf32> to vector<8x256xf32>
    %28 = arith.addf %25, %27 : vector<8x256xf32>
    %29 = math.tanh %28 : vector<8x256xf32>
    %c0_23 = arith.constant 0 : index
    %c0_24 = arith.constant 0 : index
    %30 = vector.load %arg8[%c0_23, %c0_24] : memref<8x256xf32, #tpu.memory_space<vmem>>, vector<8x256xf32>
    tpu.vector_store %arg8[%c0_23, %c0_24], %29 {strides = array<i32>} : memref<8x256xf32, #tpu.memory_space<vmem>>, vector<8x256xf32>,
    return
  }
  func.func @transform_0(%arg0: i32) -> (i32, i32) {
    %c0_i32 = arith.constant 0 : i32
    %c0_i32_0 = arith.constant 0 : i32
    return %arg0, %c0_i32 : i32, i32
  }
  func.func @transform_1(%arg0: i32) -> (i32, i32) {
    %c0_i32 = arith.constant 0 : i32
    %c0_i32_0 = arith.constant 0 : i32
    %c0_i32_1 = arith.constant 0 : i32
    return %c0_i32, %c0_i32_0 : i32, i32
  }
  func.func @transform_2(%arg0: i32) -> (i32, i32) {
    %c0_i32 = arith.constant 0 : i32
    %c0_i32_0 = arith.constant 0 : i32
    %c0_i32_1 = arith.constant 0 : i32
    return %c0_i32, %c0_i32_0 : i32, i32
  }
  func.func @transform_3(%arg0: i32) -> (i32, i32) {
    %c0_i32 = arith.constant 0 : i32
    %c0_i32_0 = arith.constant 0 : i32
    %c0_i32_1 = arith.constant 0 : i32
    return %c0_i32, %c0_i32_0 : i32, i32
  }
  func.func @transform_4(%arg0: i32) -> (i32, i32) {
    %c0_i32 = arith.constant 0 : i32
    %c0_i32_0 = arith.constant 0 : i32
    %c0_i32_1 = arith.constant 0 : i32
    return %c0_i32, %c0_i32_0 : i32, i32
  }
  func.func @transform_5(%arg0: i32) -> (i32, i32) {
    %c0_i32 = arith.constant 0 : i32
    %c0_i32_0 = arith.constant 0 : i32
    %c0_i32_1 = arith.constant 0 : i32
    return %c0_i32, %c0_i32_0 : i32, i32
  }
  func.func @transform_6(%arg0: i32) -> (i32, i32) {
    %c0_i32 = arith.constant 0 : i32
    %c0_i32_0 = arith.constant 0 : i32
    %c0_i32_1 = arith.constant 0 : i32
    return %c0_i32, %c0_i32_0 : i32, i32
  }
  func.func @transform_7(%arg0: i32) -> (i32, i32) {
    %c0_i32 = arith.constant 0 : i32
    %c0_i32_0 = arith.constant 0 : i32
    return %arg0, %c0_i32 : i32, i32
  }
}

</mosaic_0001>

<llo_original>
// kernel: tpu_custom_call.1
$region0: #{tpu_custom_call.1}
  #allocation0 [shape = 'u32[]', space=smem, size = 0x4, offset = 0x4, fixed_abs, tag = 'smem constant byte address 0x4 - core index']
  #allocation1 [shape = 'u32[144,128]{1,0:T(1,128)}', space=vmem, size = 0x12000, scoped, tag = 'internal scratch']
  #allocation2 [shape = 'bf16[8,128]{1,0:T(8,128)(2,1)}', space=vmem, size = 0x800, scoped, tag = 'scratch operand']
  %s0 = inlined_call_operand.hbm [shape: f32[8,100], index: 0, kind: input, shape index: {}]
  %s1 = inlined_call_operand.hbm [shape: bf16[128,512], index: 1, kind: input, shape index: {}]
  %s2 = inlined_call_operand.vmem [shape: f32[1,512], index: 2, kind: input, shape index: {}]
  %s3 = inlined_call_operand.hbm [shape: bf16[512,512], index: 3, kind: input, shape index: {}]
  %s4 = inlined_call_operand.vmem [shape: f32[1,512], index: 4, kind: input, shape index: {}]
  %s5 = inlined_call_operand.hbm [shape: bf16[512,256], index: 5, kind: input, shape index: {}]
  %s6 = inlined_call_operand.vmem [shape: f32[1,256], index: 6, kind: input, shape index: {}]
  %s7 = inlined_call_operand.hbm [shape: f32[8,256], index: 7, kind: output, shape index: {}]
  %s8 = sld [smem:[#allocation0]]
  $region54: #{tpu_custom_call.1} parent=0
    _
  %s10 = ssub.s32 1, %s8
  %s11 = scalar_select 0, %s10, %s8
  $region1: #{tpu_custom_call.1} parent=0
    #allocation3 [shape = 'u8[4096]{0}', space=vmem, size = 0x1000, scoped, tag = 'input window, operand 0, single buffered']
    #allocation4 [shape = 's32[1]{0}', space=sflag, size = 0x4, scoped, tag = 'scoped memory for tpu_custom_call.1']
    #allocation5 [shape = 's32[1]{0}', space=sflag, size = 0x4, scoped, tag = 'scoped memory for tpu_custom_call.1']
    #allocation6 [shape = 'u8[131072]{0}', space=vmem, size = 0x20000, scoped, tag = 'input window, operand 1, single buffered']
    #allocation7 [shape = 's32[1]{0}', space=sflag, size = 0x4, scoped, tag = 'scoped memory for tpu_custom_call.1']
    #allocation8 [shape = 'u8[524288]{0}', space=vmem, size = 0x80000, scoped, tag = 'input window, operand 3, single buffered']
    #allocation9 [shape = 'u8[262144]{0}', space=vmem, size = 0x40000, scoped, tag = 'input window, operand 5, single buffered']
    #allocation10 [shape = 's32[1]{0}', space=sflag, size = 0x4, scoped, tag = 'scoped memory for tpu_custom_call.1']
    #allocation11 [shape = 'u8[8192]{0}', space=vmem, size = 0x2000, scoped, tag = 'output window, operand 0, single buffered']
    %12 = vsyncpa [#allocation4], 0
    %13 = vsyncpa [#allocation7], 0
    %14 = vsyncpa [#allocation10], 0
    %15 = vsyncpa [#allocation5], 0
    // Predicated region
    $region2: #{tpu_custom_call.1} parent=1 // pred_check
      _
    $region3: #{tpu_custom_call.1} parent=1 // pred_check_branch
      %17 = sbr.rel (0) target = $region5
    $region4: #{tpu_custom_call.1} parent=1 // pred_region
      %s19 = ssub.s32 128, 128
      %20 = vsyncadd [#allocation4], %s19
      %s22 = sshll.u32 [#allocation3], 4
      %s23 = int_to_ptr.vmem [resolvable:$true] %s22
      %25 = dma.hbm_to_vmem [thread:$0]  %s0, 128, %s23, [#allocation4]
    $region5: #{tpu_custom_call.1} parent=1 // pred_fallthru
      _
    // Predicated region
    $region6: #{tpu_custom_call.1} parent=1 // pred_check
      _
    $region7: #{tpu_custom_call.1} parent=1 // pred_check_branch
      %27 = sbr.rel (0) target = $region9
    $region8: #{tpu_custom_call.1} parent=1 // pred_region
      %s29 = ssub.s32 4096, 4096
      %30 = vsyncadd [#allocation7], %s29
      %s31 = sshll.u32 [#allocation6], 4
      %s32 = int_to_ptr.vmem [resolvable:$true] %s31
      %37 = dma.hbm_to_vmem [thread:$0]  %s1, 4096, %s32, [#allocation7], 256, 256, 16
    $region9: #{tpu_custom_call.1} parent=1 // pred_fallthru
      _
    // Predicated region
    $region10: #{tpu_custom_call.1} parent=1 // pred_check
      _
    $region11: #{tpu_custom_call.1} parent=1 // pred_check_branch
      %39 = sbr.rel (0) target = $region13
    $region12: #{tpu_custom_call.1} parent=1 // pred_region
      _
    $region13: #{tpu_custom_call.1} parent=1 // pred_fallthru
      _
    // Predicated region
    $region14: #{tpu_custom_call.1} parent=1 // pred_check
      _
    $region15: #{tpu_custom_call.1} parent=1 // pred_check_branch
      %41 = sbr.rel (0) target = $region17
    $region16: #{tpu_custom_call.1} parent=1 // pred_region
      %s43 = ssub.s32 16384, 16384
      %44 = vsyncadd [#allocation7], %s43
      %s45 = sshll.u32 [#allocation8], 4
      %s46 = int_to_ptr.vmem [resolvable:$true] %s45
      %51 = dma.hbm_to_vmem [thread:$0]  %s3, 16384, %s46, [#allocation7], 256, 256, 16
    $region17: #{tpu_custom_call.1} parent=1 // pred_fallthru
      _
    // Predicated region
    $region18: #{tpu_custom_call.1} parent=1 // pred_check
      _
    $region19: #{tpu_custom_call.1} parent=1 // pred_check_branch
      %53 = sbr.rel (0) target = $region21
    $region20: #{tpu_custom_call.1} parent=1 // pred_region
      _
    $region21: #{tpu_custom_call.1} parent=1 // pred_fallthru
      _
    // Predicated region
    $region22: #{tpu_custom_call.1} parent=1 // pred_check
      _
    $region23: #{tpu_custom_call.1} parent=1 // pred_check_branch
      %55 = sbr.rel (0) target = $region25
    $region24: #{tpu_custom_call.1} parent=1 // pred_region
      %s57 = ssub.s32 8192, 8192
      %58 = vsyncadd [#allocation10], %s57
      %s59 = sshll.u32 [#allocation9], 4
      %s60 = int_to_ptr.vmem [resolvable:$true] %s59
      %65 = dma.hbm_to_vmem [thread:$0]  %s5, 8192, %s60, [#allocation10], 128, 128, 8
    $region25: #{tpu_custom_call.1} parent=1 // pred_fallthru
      _
    // Predicated region
    $region26: #{tpu_custom_call.1} parent=1 // pred_check
      _
    $region27: #{tpu_custom_call.1} parent=1 // pred_check_branch
      %67 = sbr.rel (0) target = $region29
    $region28: #{tpu_custom_call.1} parent=1 // pred_region
      _
    $region29: #{tpu_custom_call.1} parent=1 // pred_fallthru
      _
    // Predicated region
    $region30: #{tpu_custom_call.1} parent=1 // pred_check
      _
    $region31: #{tpu_custom_call.1} parent=1 // pred_check_branch
      %69 = sbr.rel (0) target = $region33
    $region32: #{tpu_custom_call.1} parent=1 // pred_region
      %70 = dma.done [#allocation4], 128
    $region33: #{tpu_custom_call.1} parent=1 // pred_fallthru
      _
    // Predicated region
    $region34: #{tpu_custom_call.1} parent=1 // pred_check
      _
    $region35: #{tpu_custom_call.1} parent=1 // pred_check_branch
      %72 = sbr.rel (0) target = $region37
    $region36: #{tpu_custom_call.1} parent=1 // pred_region
      %73 = dma.done [#allocation7], 4096
    $region37: #{tpu_custom_call.1} parent=1 // pred_fallthru
      _
    // Predicated region
    $region38: #{tpu_custom_call.1} parent=1 // pred_check
      _
    $region39: #{tpu_custom_call.1} parent=1 // pred_check_branch
      %75 = sbr.rel (0) target = $region41
    $region40: #{tpu_custom_call.1} parent=1 // pred_region
      %76 = dma.done [#allocation7], 16384
    $region41: #{tpu_custom_call.1} parent=1 // pred_fallthru
      _
    // Predicated region
    $region42: #{tpu_custom_call.1} parent=1 // pred_check
      _
    $region43: #{tpu_custom_call.1} parent=1 // pred_check_branch
      %78 = sbr.rel (0) target = $region45
    $region44: #{tpu_custom_call.1} parent=1 // pred_region
      %79 = dma.done [#allocation10], 8192
    $region45: #{tpu_custom_call.1} parent=1 // pred_fallthru
      _
    %v81 = vld [vmem:[#allocation3] sm:$0xff]
    %v82 = vpack.c.bf16 %v81, %v81
    %vm83 = vcmask 814080
    %84 = vst.msk [vmem:[#allocation2] sm:$0xf] %vm83, %v82
    %vm85 = vcmask 1044256
    %86 = vst.msk [vmem:[#allocation2] sm:$0xf] %vm85, 0
    %v87 = vld [vmem:[#allocation2] sm:$0xf]
    %v88 = vld [vmem:[#allocation6] sm:$0xff]
    %v89 = vld [vmem:[#allocation6 + $0x8] sm:$0xff]
    %v90 = vld [vmem:[#allocation6 + $0x10] sm:$0xff]
    %v91 = vld [vmem:[#allocation6 + $0x18] sm:$0xff]
    %v92 = vld [vmem:[#allocation6 + $0x20] sm:$0xff]
    %v93 = vld [vmem:[#allocation6 + $0x28] sm:$0xff]
    %v94 = vld [vmem:[#allocation6 + $0x30] sm:$0xff]
    %v95 = vld [vmem:[#allocation6 + $0x38] sm:$0xff]
    %v96 = vld [vmem:[#allocation6 + $0x40] sm:$0xff]
    %v97 = vld [vmem:[#allocation6 + $0x48] sm:$0xff]
    %v98 = vld [vmem:[#allocation6 + $0x50] sm:$0xff]
    %v99 = vld [vmem:[#allocation6 + $0x58] sm:$0xff]
    %v100 = vld [vmem:[#allocation6 + $0x60] sm:$0xff]
    %v101 = vld [vmem:[#allocation6 + $0x68] sm:$0xff]
    %v102 = vld [vmem:[#allocation6 + $0x70] sm:$0xff]
    %v103 = vld [vmem:[#allocation6 + $0x78] sm:$0xff]
    %v104 = vld [vmem:[#allocation6 + $0x80] sm:$0xff]
    %v105 = vld [vmem:[#allocation6 + $0x88] sm:$0xff]
    %v106 = vld [vmem:[#allocation6 + $0x90] sm:$0xff]
    %v107 = vld [vmem:[#allocation6 + $0x98] sm:$0xff]
    %v108 = vld [vmem:[#allocation6 + $0xa0] sm:$0xff]
    %v109 = vld [vmem:[#allocation6 + $0xa8] sm:$0xff]
    %v110 = vld [vmem:[#allocation6 + $0xb0] sm:$0xff]
    %v111 = vld [vmem:[#allocation6 + $0xb8] sm:$0xff]
    %v112 = vld [vmem:[#allocation6 + $0xc0] sm:$0xff]
    %v113 = vld [vmem:[#allocation6 + $0xc8] sm:$0xff]
    %v114 = vld [vmem:[#allocation6 + $0xd0] sm:$0xff]
    %v115 = vld [vmem:[#allocation6 + $0xd8] sm:$0xff]
    %v116 = vld [vmem:[#allocation6 + $0xe0] sm:$0xff]
    %v117 = vld [vmem:[#allocation6 + $0xe8] sm:$0xff]
    %v118 = vld [vmem:[#allocation6 + $0xf0] sm:$0xff]
    %v119 = vld [vmem:[#allocation6 + $0xf8] sm:$0xff]
    %v152 = vunpack.c.l.b16 %v88
    %v153 = vunpack.c.h.b16 %v88
    %v154 = vunpack.c.l.b16 %v89
    %v155 = vunpack.c.h.b16 %v89
    %v156 = vunpack.c.l.b16 %v90
    %v157 = vunpack.c.h.b16 %v90
    %v158 = vunpack.c.l.b16 %v91
    %v159 = vunpack.c.h.b16 %v91
    %v160 = vunpack.c.l.b16 %v92
    %v161 = vunpack.c.h.b16 %v92
    %v162 = vunpack.c.l.b16 %v93
    %v163 = vunpack.c.h.b16 %v93
    %v164 = vunpack.c.l.b16 %v94
    %v165 = vunpack.c.h.b16 %v94
    %v166 = vunpack.c.l.b16 %v95
    %v167 = vunpack.c.h.b16 %v95
    %v168 = vunpack.c.l.b16 %v96
    %v169 = vunpack.c.h.b16 %v96
    %v170 = vunpack.c.l.b16 %v97
    %v171 = vunpack.c.h.b16 %v97
    %v172 = vunpack.c.l.b16 %v98
    %v173 = vunpack.c.h.b16 %v98
    %v174 = vunpack.c.l.b16 %v99
    %v175 = vunpack.c.h.b16 %v99
    %v176 = vunpack.c.l.b16 %v100
    %v177 = vunpack.c.h.b16 %v100
    %v178 = vunpack.c.l.b16 %v101
    %v179 = vunpack.c.h.b16 %v101
    %v180 = vunpack.c.l.b16 %v102
    %v181 = vunpack.c.h.b16 %v102
    %v182 = vunpack.c.l.b16 %v103
    %v183 = vunpack.c.h.b16 %v103
    %v184 = vunpack.c.l.b16 %v104
    %v185 = vunpack.c.h.b16 %v104
    %v186 = vunpack.c.l.b16 %v105
    %v187 = vunpack.c.h.b16 %v105
    %v188 = vunpack.c.l.b16 %v106
    %v189 = vunpack.c.h.b16 %v106
    %v190 = vunpack.c.l.b16 %v107
    %v191 = vunpack.c.h.b16 %v107
    %v192 = vunpack.c.l.b16 %v108
    %v193 = vunpack.c.h.b16 %v108
    %v194 = vunpack.c.l.b16 %v109
    %v195 = vunpack.c.h.b16 %v109
    %v196 = vunpack.c.l.b16 %v110
    %v197 = vunpack.c.h.b16 %v110
    %v198 = vunpack.c.l.b16 %v111
    %v199 = vunpack.c.h.b16 %v111
    %v200 = vunpack.c.l.b16 %v112
    %v201 = vunpack.c.h.b16 %v112
    %v202 = vunpack.c.l.b16 %v113
    %v203 = vunpack.c.h.b16 %v113
    %v204 = vunpack.c.l.b16 %v114
    %v205 = vunpack.c.h.b16 %v114
    %v206 = vunpack.c.l.b16 %v115
    %v207 = vunpack.c.h.b16 %v115
    %v208 = vunpack.c.l.b16 %v116
    %v209 = vunpack.c.h.b16 %v116
    %v210 = vunpack.c.l.b16 %v117
    %v211 = vunpack.c.h.b16 %v117
    %v212 = vunpack.c.l.b16 %v118
    %v213 = vunpack.c.h.b16 %v118
    %v214 = vunpack.c.l.b16 %v119
    %v215 = vunpack.c.h.b16 %v119
    %v216 = vpack.c.b16 %v156, %v152
    %v217 = vpack.c.b16 %v157, %v153
    %v218 = vpack.c.b16 %v158, %v154
    %v219 = vpack.c.b16 %v159, %v155
    %v220 = vpack.c.b16 %v164, %v160
    %v221 = vpack.c.b16 %v165, %v161
    %v222 = vpack.c.b16 %v166, %v162
    %v223 = vpack.c.b16 %v167, %v163
    %v224 = vpack.c.b16 %v172, %v168
    %v225 = vpack.c.b16 %v173, %v169
    %v226 = vpack.c.b16 %v174, %v170
    %v227 = vpack.c.b16 %v175, %v171
    %v228 = vpack.c.b16 %v180, %v176
    %v229 = vpack.c.b16 %v181, %v177
    %v230 = vpack.c.b16 %v182, %v178
    %v231 = vpack.c.b16 %v183, %v179
    %v232 = vpack.c.b16 %v188, %v184
    %v233 = vpack.c.b16 %v189, %v185
    %v234 = vpack.c.b16 %v190, %v186
    %v235 = vpack.c.b16 %v191, %v187
    %v236 = vpack.c.b16 %v196, %v192
    %v237 = vpack.c.b16 %v197, %v193
    %v238 = vpack.c.b16 %v198, %v194
    %v239 = vpack.c.b16 %v199, %v195
    %v240 = vpack.c.b16 %v204, %v200
    %v241 = vpack.c.b16 %v205, %v201
    %v242 = vpack.c.b16 %v206, %v202
    %v243 = vpack.c.b16 %v207, %v203
    %v244 = vpack.c.b16 %v212, %v208
    %v245 = vpack.c.b16 %v213, %v209
    %v246 = vpack.c.b16 %v214, %v210
    %v247 = vpack.c.b16 %v215, %v211
    %280 = vmatprep.subr.bf16.mxu0 %v217
    %281 = vmatpush1.bf16.msra.mxu0 %v216
    %282 = vmatprep.subr.bf16.mxu0 %v221
    %283 = vmatpush1.bf16.msra.mxu0 %v220
    %284 = vmatprep.subr.bf16.mxu0 %v225
    %285 = vmatpush1.bf16.msra.mxu0 %v224
    %286 = vmatprep.subr.bf16.mxu0 %v229
    %287 = vmatpush1.bf16.msra.mxu0 %v228
    %288 = vmatprep.subr.bf16.mxu0 %v233
    %289 = vmatpush1.bf16.msra.mxu0 %v232
    %290 = vmatprep.subr.bf16.mxu0 %v237
    %291 = vmatpush1.bf16.msra.mxu0 %v236
    %292 = vmatprep.subr.bf16.mxu0 %v241
    %293 = vmatpush1.bf16.msra.mxu0 %v240
    %294 = vmatprep.subr.bf16.mxu0 %v245
    %295 = vmatpush1.bf16.msra.mxu0 %v244
    %296 = vmatprep.subr.bf16.mxu0 0
    %297 = vmatpush1.bf16.msra.mxu0 0
    %298 = vmatprep.subr.bf16.mxu0 0
    %299 = vmatpush1.bf16.msra.mxu0 0
    %300 = vmatprep.subr.bf16.mxu0 0
    %301 = vmatpush1.bf16.msra.mxu0 0
    %302 = vmatprep.subr.bf16.mxu0 0
    %303 = vmatpush1.bf16.msra.mxu0 0
    %304 = vmatprep.subr.bf16.mxu0 0
    %305 = vmatpush1.bf16.msra.mxu0 0
    %306 = vmatprep.subr.bf16.mxu0 0
    %307 = vmatpush1.bf16.msra.mxu0 0
    %308 = vmatprep.subr.bf16.mxu0 0
    %309 = vmatpush1.bf16.msra.mxu0 0
    %310 = vmatprep.subr.bf16.mxu0 0
    %311 = vmatpush1.bf16.msra.mxu0 0
    %312 = vmatprep.mubr.bf16.mxu0 0
    %313 = vmatmul.mubr.bf16.gmra.mrb[0].mxu0 %v87
    %v314 = vpop.f32.mrb[0].mxu0
    %v315 = vadd.f32 0.0, %v314
    %v316 = vpop.f32.mrb[0].mxu0
    %v317 = vadd.f32 0.0, %v316
    %v318 = vpop.f32.mrb[0].mxu0
    %v319 = vpop.f32.mrb[0].mxu0
    %320 = vdwg.mxu0
    %321 = vmatprep.subr.bf16.mxu0 %v219
    %322 = vmatpush1.bf16.msra.mxu0 %v218
    %323 = vmatprep.subr.bf16.mxu0 %v223
    %324 = vmatpush1.bf16.msra.mxu0 %v222
    %325 = vmatprep.subr.bf16.mxu0 %v227
    %326 = vmatpush1.bf16.msra.mxu0 %v226
    %327 = vmatprep.subr.bf16.mxu0 %v231
    %328 = vmatpush1.bf16.msra.mxu0 %v230
    %329 = vmatprep.subr.bf16.mxu0 %v235
    %330 = vmatpush1.bf16.msra.mxu0 %v234
    %331 = vmatprep.subr.bf16.mxu0 %v239
    %332 = vmatpush1.bf16.msra.mxu0 %v238
    %333 = vmatprep.subr.bf16.mxu0 %v243
    %334 = vmatpush1.bf16.msra.mxu0 %v242
    %335 = vmatprep.subr.bf16.mxu0 %v247
    %336 = vmatpush1.bf16.msra.mxu0 %v246
    %337 = vmatprep.subr.bf16.mxu0 0
    %338 = vmatpush1.bf16.msra.mxu0 0
    %339 = vmatprep.subr.bf16.mxu0 0
    %340 = vmatpush1.bf16.msra.mxu0 0
    %341 = vmatprep.subr.bf16.mxu0 0
    %342 = vmatpush1.bf16.msra.mxu0 0
    %343 = vmatprep.subr.bf16.mxu0 0
    %344 = vmatpush1.bf16.msra.mxu0 0
    %345 = vmatprep.subr.bf16.mxu0 0
    %346 = vmatpush1.bf16.msra.mxu0 0
    %347 = vmatprep.subr.bf16.mxu0 0
    %348 = vmatpush1.bf16.msra.mxu0 0
    %349 = vmatprep.subr.bf16.mxu0 0
    %350 = vmatpush1.bf16.msra.mxu0 0
    %351 = vmatprep.subr.bf16.mxu0 0
    %352 = vmatpush1.bf16.msra.mxu0 0
    %353 = vmatprep.mubr.bf16.mxu0 0
    %354 = vmatmul.mubr.bf16.gmra.mrb[0].mxu0 %v87
    %v355 = vpop.f32.mrb[0].mxu0
    %v356 = vadd.f32 0.0, %v355
    %v357 = vpop.f32.mrb[0].mxu0
    %v358 = vadd.f32 0.0, %v357
    %v359 = vpop.f32.mrb[0].mxu0
    %v360 = vpop.f32.mrb[0].mxu0
    %361 = vdwg.mxu0
    %v362 = vpack.c.bf16 %v315, %v315
    %v363 = vpack.c.bf16 %v317, %v317
    %v364 = vpack.c.bf16 %v356, %v356
    %v365 = vpack.c.bf16 %v358, %v358
    %v366 = vld [vmem:[%s2] sm:$0xf]
    %v368 = vlaneseq
    %v369 = vshrl.u32 %v368, 7
    %v370 = vsub.s32 0, %v369
    %v371 = vrot.slane %v366, %v370
    %v372 = vlaneseq
    %v373 = vshrl.u32 %v372, 7
    %v374 = vsub.s32 1, %v373
    %v375 = vrot.slane %v366, %v374
    %v376 = vlaneseq
    %v377 = vshrl.u32 %v376, 7
    %v378 = vsub.s32 2, %v377
    %v379 = vrot.slane %v366, %v378
    %v380 = vlaneseq
    %v381 = vshrl.u32 %v380, 7
    %v382 = vsub.s32 3, %v381
    %v383 = vrot.slane %v366, %v382
    %v388 = vpack.c.bf16 %v371, %v371
    %v389 = vpack.c.bf16 %v375, %v375
    %v390 = vpack.c.bf16 %v379, %v379
    %v391 = vpack.c.bf16 %v383, %v383
    %v393 = vpack.i.b16 %v388, %v388
    %v395 = vlaneseq
    %v396 = vshrl.u32 %v395, 7
    %v397 = vsub.s32 0, %v396
    %v398 = vrot.slane %v393, %v397
    %v400 = vpack.i.b16 %v389, %v389
    %v402 = vlaneseq
    %v403 = vshrl.u32 %v402, 7
    %v404 = vsub.s32 0, %v403
    %v405 = vrot.slane %v400, %v404
    %v407 = vpack.i.b16 %v390, %v390
    %v409 = vlaneseq
    %v410 = vshrl.u32 %v409, 7
    %v411 = vsub.s32 0, %v410
    %v412 = vrot.slane %v407, %v411
    %v414 = vpack.i.b16 %v391, %v391
    %v416 = vlaneseq
    %v417 = vshrl.u32 %v416, 7
    %v418 = vsub.s32 0, %v417
    %v419 = vrot.slane %v414, %v418
    %v420 = vadd.bf16 %v362, %v398
    %v421 = vadd.bf16 %v363, %v405
    %v422 = vadd.bf16 %v364, %v412
    %v423 = vadd.bf16 %v365, %v419
    %v424 = vmax.bf16 %v420, 0
    %v425 = vmax.bf16 %v421, 0
    %v426 = vmax.bf16 %v422, 0
    %v427 = vmax.bf16 %v423, 0
    %v428 = vld [vmem:[#allocation8] sm:$0xff]
    %v429 = vld [vmem:[#allocation8 + $0x8] sm:$0xff]
    %v430 = vld [vmem:[#allocation8 + $0x10] sm:$0xff]
    %v431 = vld [vmem:[#allocation8 + $0x18] sm:$0xff]
    %v432 = vld [vmem:[#allocation8 + $0x20] sm:$0xff]
    %v433 = vld [vmem:[#allocation8 + $0x28] sm:$0xff]
    %v434 = vld [vmem:[#allocation8 + $0x30] sm:$0xff]
    %v435 = vld [vmem:[#allocation8 + $0x38] sm:$0xff]
    %v436 = vld [vmem:[#allocation8 + $0x40] sm:$0xff]
    %v437 = vld [vmem:[#allocation8 + $0x48] sm:$0xff]
    %v438 = vld [vmem:[#allocation8 + $0x50] sm:$0xff]
    %v439 = vld [vmem:[#allocation8 + $0x58] sm:$0xff]
    %v440 = vld [vmem:[#allocation8 + $0x60] sm:$0xff]
    %v441 = vld [vmem:[#allocation8 + $0x68] sm:$0xff]
    %v442 = vld [vmem:[#allocation8 + $0x70] sm:$0xff]
    %v443 = vld [vmem:[#allocation8 + $0x78] sm:$0xff]
    %v444 = vld [vmem:[#allocation8 + $0x80] sm:$0xff]
    %v445 = vld [vmem:[#allocation8 + $0x88] sm:$0xff]
    %v446 = vld [vmem:[#allocation8 + $0x90] sm:$0xff]
    %v447 = vld [vmem:[#allocation8 + $0x98] sm:$0xff]
    %v448 = vld [vmem:[#allocation8 + $0xa0] sm:$0xff]
    %v449 = vld [vmem:[#allocation8 + $0xa8] sm:$0xff]
    %v450 = vld [vmem:[#allocation8 + $0xb0] sm:$0xff]
    %v451 = vld [vmem:[#allocation8 + $0xb8] sm:$0xff]
    %v452 = vld [vmem:[#allocation8 + $0xc0] sm:$0xff]
    %v453 = vld [vmem:[#allocation8 + $0xc8] sm:$0xff]
    %v454 = vld [vmem:[#allocation8 + $0xd0] sm:$0xff]
    %v455 = vld [vmem:[#allocation8 + $0xd8] sm:$0xff]
    %v456 = vld [vmem:[#allocation8 + $0xe0] sm:$0xff]
    %v457 = vld [vmem:[#allocation8 + $0xe8] sm:$0xff]
    %v458 = vld [vmem:[#allocation8 + $0xf0] sm:$0xff]
    %v459 = vld [vmem:[#allocation8 + $0xf8] sm:$0xff]
    %v460 = vld [vmem:[#allocation8 + $0x100] sm:$0xff]
    %v461 = vld [vmem:[#allocation8 + $0x108] sm:$0xff]
    %v462 = vld [vmem:[#allocation8 + $0x110] sm:$0xff]
    %v463 = vld [vmem:[#allocation8 + $0x118] sm:$0xff]
    %v464 = vld [vmem:[#allocation8 + $0x120] sm:$0xff]
    %v465 = vld [vmem:[#allocation8 + $0x128] sm:$0xff]
    %v466 = vld [vmem:[#allocation8 + $0x130] sm:$0xff]
    %v467 = vld [vmem:[#allocation8 + $0x138] sm:$0xff]
    %v468 = vld [vmem:[#allocation8 + $0x140] sm:$0xff]
    %v469 = vld [vmem:[#allocation8 + $0x148] sm:$0xff]
    %v470 = vld [vmem:[#allocation8 + $0x150] sm:$0xff]
    %v471 = vld [vmem:[#allocation8 + $0x158] sm:$0xff]
    %v472 = vld [vmem:[#allocation8 + $0x160] sm:$0xff]
    %v473 = vld [vmem:[#allocation8 + $0x168] sm:$0xff]
    %v474 = vld [vmem:[#allocation8 + $0x170] sm:$0xff]
    %v475 = vld [vmem:[#allocation8 + $0x178] sm:$0xff]
    %v476 = vld [vmem:[#allocation8 + $0x180] sm:$0xff]
    %v477 = vld [vmem:[#allocation8 + $0x188] sm:$0xff]
    %v478 = vld [vmem:[#allocation8 + $0x190] sm:$0xff]
    %v479 = vld [vmem:[#allocation8 + $0x198] sm:$0xff]
    %v480 = vld [vmem:[#allocation8 + $0x1a0] sm:$0xff]
    %v481 = vld [vmem:[#allocation8 + $0x1a8] sm:$0xff]
    %v482 = vld [vmem:[#allocation8 + $0x1b0] sm:$0xff]
    %v483 = vld [vmem:[#allocation8 + $0x1b8] sm:$0xff]
    %v484 = vld [vmem:[#allocation8 + $0x1c0] sm:$0xff]
    %v485 = vld [vmem:[#allocation8 + $0x1c8] sm:$0xff]
    %v486 = vld [vmem:[#allocation8 + $0x1d0] sm:$0xff]
    %v487 = vld [vmem:[#allocation8 + $0x1d8] sm:$0xff]
    %v488 = vld [vmem:[#allocation8 + $0x1e0] sm:$0xff]
    %v489 = vld [vmem:[#allocation8 + $0x1e8] sm:$0xff]
    %v490 = vld [vmem:[#allocation8 + $0x1f0] sm:$0xff]
    %v491 = vld [vmem:[#allocation8 + $0x1f8] sm:$0xff]
    %v492 = vld [vmem:[#allocation8 + $0x200] sm:$0xff]
    %v493 = vld [vmem:[#allocation8 + $0x208] sm:$0xff]
    %v494 = vld [vmem:[#allocation8 + $0x210] sm:$0xff]
    %v495 = vld [vmem:[#allocation8 + $0x218] sm:$0xff]
    %v496 = vld [vmem:[#allocation8 + $0x220] sm:$0xff]
    %v497 = vld [vmem:[#allocation8 + $0x228] sm:$0xff]
    %v498 = vld [vmem:[#allocation8 + $0x230] sm:$0xff]
    %v499 = vld [vmem:[#allocation8 + $0x238] sm:$0xff]
    %v500 = vld [vmem:[#allocation8 + $0x240] sm:$0xff]
    %v501 = vld [vmem:[#allocation8 + $0x248] sm:$0xff]
    %v502 = vld [vmem:[#allocation8 + $0x250] sm:$0xff]
    %v503 = vld [vmem:[#allocation8 + $0x258] sm:$0xff]
    %v504 = vld [vmem:[#allocation8 + $0x260] sm:$0xff]
    %v505 = vld [vmem:[#allocation8 + $0x268] sm:$0xff]
    %v506 = vld [vmem:[#allocation8 + $0x270] sm:$0xff]
    %v507 = vld [vmem:[#allocation8 + $0x278] sm:$0xff]
    %v508 = vld [vmem:[#allocation8 + $0x280] sm:$0xff]
    %v509 = vld [vmem:[#allocation8 + $0x288] sm:$0xff]
    %v510 = vld [vmem:[#allocation8 + $0x290] sm:$0xff]
    %v511 = vld [vmem:[#allocation8 + $0x298] sm:$0xff]
    %v512 = vld [vmem:[#allocation8 + $0x2a0] sm:$0xff]
    %v513 = vld [vmem:[#allocation8 + $0x2a8] sm:$0xff]
    %v514 = vld [vmem:[#allocation8 + $0x2b0] sm:$0xff]
    %v515 = vld [vmem:[#allocation8 + $0x2b8] sm:$0xff]
    %v516 = vld [vmem:[#allocation8 + $0x2c0] sm:$0xff]
    %v517 = vld [vmem:[#allocation8 + $0x2c8] sm:$0xff]
    %v518 = vld [vmem:[#allocation8 + $0x2d0] sm:$0xff]
    %v519 = vld [vmem:[#allocation8 + $0x2d8] sm:$0xff]
    %v520 = vld [vmem:[#allocation8 + $0x2e0] sm:$0xff]
    %v521 = vld [vmem:[#allocation8 + $0x2e8] sm:$0xff]
    %v522 = vld [vmem:[#allocation8 + $0x2f0] sm:$0xff]
    %v523 = vld [vmem:[#allocation8 + $0x2f8] sm:$0xff]
    %v524 = vld [vmem:[#allocation8 + $0x300] sm:$0xff]
    %v525 = vld [vmem:[#allocation8 + $0x308] sm:$0xff]
    %v526 = vld [vmem:[#allocation8 + $0x310] sm:$0xff]
    %v527 = vld [vmem:[#allocation8 + $0x318] sm:$0xff]
    %v528 = vld [vmem:[#allocation8 + $0x320] sm:$0xff]
    %v529 = vld [vmem:[#allocation8 + $0x328] sm:$0xff]
    %v530 = vld [vmem:[#allocation8 + $0x330] sm:$0xff]
    %v531 = vld [vmem:[#allocation8 + $0x338] sm:$0xff]
    %v532 = vld [vmem:[#allocation8 + $0x340] sm:$0xff]
    %v533 = vld [vmem:[#allocation8 + $0x348] sm:$0xff]
    %v534 = vld [vmem:[#allocation8 + $0x350] sm:$0xff]
    %v535 = vld [vmem:[#allocation8 + $0x358] sm:$0xff]
    %v536 = vld [vmem:[#allocation8 + $0x360] sm:$0xff]
    %v537 = vld [vmem:[#allocation8 + $0x368] sm:$0xff]
    %v538 = vld [vmem:[#allocation8 + $0x370] sm:$0xff]
    %v539 = vld [vmem:[#allocation8 + $0x378] sm:$0xff]
    %v540 = vld [vmem:[#allocation8 + $0x380] sm:$0xff]
    %v541 = vld [vmem:[#allocation8 + $0x388] sm:$0xff]
    %v542 = vld [vmem:[#allocation8 + $0x390] sm:$0xff]
    %v543 = vld [vmem:[#allocation8 + $0x398] sm:$0xff]
    %v544 = vld [vmem:[#allocation8 + $0x3a0] sm:$0xff]
    %v545 = vld [vmem:[#allocation8 + $0x3a8] sm:$0xff]
    %v546 = vld [vmem:[#allocation8 + $0x3b0] sm:$0xff]
    %v547 = vld [vmem:[#allocation8 + $0x3b8] sm:$0xff]
    %v548 = vld [vmem:[#allocation8 + $0x3c0] sm:$0xff]
    %v549 = vld [vmem:[#allocation8 + $0x3c8] sm:$0xff]
    %v550 = vld [vmem:[#allocation8 + $0x3d0] sm:$0xff]
    %v551 = vld [vmem:[#allocation8 + $0x3d8] sm:$0xff]
    %v552 = vld [vmem:[#allocation8 + $0x3e0] sm:$0xff]
    %v553 = vld [vmem:[#allocation8 + $0x3e8] sm:$0xff]
    %v554 = vld [vmem:[#allocation8 + $0x3f0] sm:$0xff]
    %v555 = vld [vmem:[#allocation8 + $0x3f8] sm:$0xff]
    %v684 = vunpack.c.l.b16 %v428
    %v685 = vunpack.c.h.b16 %v428
    %v686 = vunpack.c.l.b16 %v429
    %v687 = vunpack.c.h.b16 %v429
    %v688 = vunpack.c.l.b16 %v430
    %v689 = vunpack.c.h.b16 %v430
    %v690 = vunpack.c.l.b16 %v431
    %v691 = vunpack.c.h.b16 %v431
    %v692 = vunpack.c.l.b16 %v432
    %v693 = vunpack.c.h.b16 %v432
    %v694 = vunpack.c.l.b16 %v433
    %v695 = vunpack.c.h.b16 %v433
    %v696 = vunpack.c.l.b16 %v434
    %v697 = vunpack.c.h.b16 %v434
    %v698 = vunpack.c.l.b16 %v435
    %v699 = vunpack.c.h.b16 %v435
    %v700 = vunpack.c.l.b16 %v436
    %v701 = vunpack.c.h.b16 %v436
    %v702 = vunpack.c.l.b16 %v437
    %v703 = vunpack.c.h.b16 %v437
    %v704 = vunpack.c.l.b16 %v438
    %v705 = vunpack.c.h.b16 %v438
    %v706 = vunpack.c.l.b16 %v439
    %v707 = vunpack.c.h.b16 %v439
    %v708 = vunpack.c.l.b16 %v440
    %v709 = vunpack.c.h.b16 %v440
    %v710 = vunpack.c.l.b16 %v441
    %v711 = vunpack.c.h.b16 %v441
    %v712 = vunpack.c.l.b16 %v442
    %v713 = vunpack.c.h.b16 %v442
    %v714 = vunpack.c.l.b16 %v443
    %v715 = vunpack.c.h.b16 %v443
    %v716 = vunpack.c.l.b16 %v444
    %v717 = vunpack.c.h.b16 %v444
    %v718 = vunpack.c.l.b16 %v445
    %v719 = vunpack.c.h.b16 %v445
    %v720 = vunpack.c.l.b16 %v446
    %v721 = vunpack.c.h.b16 %v446
    %v722 = vunpack.c.l.b16 %v447
    %v723 = vunpack.c.h.b16 %v447
    %v724 = vunpack.c.l.b16 %v448
    %v725 = vunpack.c.h.b16 %v448
    %v726 = vunpack.c.l.b16 %v449
    %v727 = vunpack.c.h.b16 %v449
    %v728 = vunpack.c.l.b16 %v450
    %v729 = vunpack.c.h.b16 %v450
    %v730 = vunpack.c.l.b16 %v451
    %v731 = vunpack.c.h.b16 %v451
    %v732 = vunpack.c.l.b16 %v452
    %v733 = vunpack.c.h.b16 %v452
    %v734 = vunpack.c.l.b16 %v453
    %v735 = vunpack.c.h.b16 %v453
    %v736 = vunpack.c.l.b16 %v454
    %v737 = vunpack.c.h.b16 %v454
    %v738 = vunpack.c.l.b16 %v455
    %v739 = vunpack.c.h.b16 %v455
    %v740 = vunpack.c.l.b16 %v456
    %v741 = vunpack.c.h.b16 %v456
    %v742 = vunpack.c.l.b16 %v457
    %v743 = vunpack.c.h.b16 %v457
    %v744 = vunpack.c.l.b16 %v458
    %v745 = vunpack.c.h.b16 %v458
    %v746 = vunpack.c.l.b16 %v459
    %v747 = vunpack.c.h.b16 %v459
    %v748 = vunpack.c.l.b16 %v460
    %v749 = vunpack.c.h.b16 %v460
    %v750 = vunpack.c.l.b16 %v461
    %v751 = vunpack.c.h.b16 %v461
    %v752 = vunpack.c.l.b16 %v462
    %v753 = vunpack.c.h.b16 %v462
    %v754 = vunpack.c.l.b16 %v463
    %v755 = vunpack.c.h.b16 %v463
    %v756 = vunpack.c.l.b16 %v464
    %v757 = vunpack.c.h.b16 %v464
    %v758 = vunpack.c.l.b16 %v465
    %v759 = vunpack.c.h.b16 %v465
    %v760 = vunpack.c.l.b16 %v466
    %v761 = vunpack.c.h.b16 %v466
    %v762 = vunpack.c.l.b16 %v467
    %v763 = vunpack.c.h.b16 %v467
    %v764 = vunpack.c.l.b16 %v468
    %v765 = vunpack.c.h.b16 %v468
    %v766 = vunpack.c.l.b16 %v469
    %v767 = vunpack.c.h.b16 %v469
    %v768 = vunpack.c.l.b16 %v470
    %v769 = vunpack.c.h.b16 %v470
    %v770 = vunpack.c.l.b16 %v471
    %v771 = vunpack.c.h.b16 %v471
    %v772 = vunpack.c.l.b16 %v472
    %v773 = vunpack.c.h.b16 %v472
    %v774 = vunpack.c.l.b16 %v473
    %v775 = vunpack.c.h.b16 %v473
    %v776 = vunpack.c.l.b16 %v474
    %v777 = vunpack.c.h.b16 %v474
    %v778 = vunpack.c.l.b16 %v475
    %v779 = vunpack.c.h.b16 %v475
    %v780 = vunpack.c.l.b16 %v476
    %v781 = vunpack.c.h.b16 %v476
    %v782 = vunpack.c.l.b16 %v477
    %v783 = vunpack.c.h.b16 %v477
    %v784 = vunpack.c.l.b16 %v478
    %v785 = vunpack.c.h.b16 %v478
    %v786 = vunpack.c.l.b16 %v479
    %v787 = vunpack.c.h.b16 %v479
    %v788 = vunpack.c.l.b16 %v480
    %v789 = vunpack.c.h.b16 %v480
    %v790 = vunpack.c.l.b16 %v481
    %v791 = vunpack.c.h.b16 %v481
    %v792 = vunpack.c.l.b16 %v482
    %v793 = vunpack.c.h.b16 %v482
    %v794 = vunpack.c.l.b16 %v483
    %v795 = vunpack.c.h.b16 %v483
    %v796 = vunpack.c.l.b16 %v484
    %v797 = vunpack.c.h.b16 %v484
    %v798 = vunpack.c.l.b16 %v485
    %v799 = vunpack.c.h.b16 %v485
    %v800 = vunpack.c.l.b16 %v486
    %v801 = vunpack.c.h.b16 %v486
    %v802 = vunpack.c.l.b16 %v487
    %v803 = vunpack.c.h.b16 %v487
    %v804 = vunpack.c.l.b16 %v488
    %v805 = vunpack.c.h.b16 %v488
    %v806 = vunpack.c.l.b16 %v489
    %v807 = vunpack.c.h.b16 %v489
    %v808 = vunpack.c.l.b16 %v490
    %v809 = vunpack.c.h.b16 %v490
    %v810 = vunpack.c.l.b16 %v491
    %v811 = vunpack.c.h.b16 %v491
    %v812 = vunpack.c.l.b16 %v492
    %v813 = vunpack.c.h.b16 %v492
    %v814 = vunpack.c.l.b16 %v493
    %v815 = vunpack.c.h.b16 %v493
    %v816 = vunpack.c.l.b16 %v494
    %v817 = vunpack.c.h.b16 %v494
    %v818 = vunpack.c.l.b16 %v495
    %v819 = vunpack.c.h.b16 %v495
    %v820 = vunpack.c.l.b16 %v496
    %v821 = vunpack.c.h.b16 %v496
    %v822 = vunpack.c.l.b16 %v497
    %v823 = vunpack.c.h.b16 %v497
    %v824 = vunpack.c.l.b16 %v498
    %v825 = vunpack.c.h.b16 %v498
    %v826 = vunpack.c.l.b16 %v499
    %v827 = vunpack.c.h.b16 %v499
    %v828 = vunpack.c.l.b16 %v500
    %v829 = vunpack.c.h.b16 %v500
    %v830 = vunpack.c.l.b16 %v501
    %v831 = vunpack.c.h.b16 %v501
    %v832 = vunpack.c.l.b16 %v502
    %v833 = vunpack.c.h.b16 %v502
    %v834 = vunpack.c.l.b16 %v503
    %v835 = vunpack.c.h.b16 %v503
    %v836 = vunpack.c.l.b16 %v504
    %v837 = vunpack.c.h.b16 %v504
    %v838 = vunpack.c.l.b16 %v505
    %v839 = vunpack.c.h.b16 %v505
    %v840 = vunpack.c.l.b16 %v506
    %v841 = vunpack.c.h.b16 %v506
    %v842 = vunpack.c.l.b16 %v507
    %v843 = vunpack.c.h.b16 %v507
    %v844 = vunpack.c.l.b16 %v508
    %v845 = vunpack.c.h.b16 %v508
    %v846 = vunpack.c.l.b16 %v509
    %v847 = vunpack.c.h.b16 %v509
    %v848 = vunpack.c.l.b16 %v510
    %v849 = vunpack.c.h.b16 %v510
    %v850 = vunpack.c.l.b16 %v511
    %v851 = vunpack.c.h.b16 %v511
    %v852 = vunpack.c.l.b16 %v512
    %v853 = vunpack.c.h.b16 %v512
    %v854 = vunpack.c.l.b16 %v513
    %v855 = vunpack.c.h.b16 %v513
    %v856 = vunpack.c.l.b16 %v514
    %v857 = vunpack.c.h.b16 %v514
    %v858 = vunpack.c.l.b16 %v515
    %v859 = vunpack.c.h.b16 %v515
    %v860 = vunpack.c.l.b16 %v516
    %v861 = vunpack.c.h.b16 %v516
    %v862 = vunpack.c.l.b16 %v517
    %v863 = vunpack.c.h.b16 %v517
    %v864 = vunpack.c.l.b16 %v518
    %v865 = vunpack.c.h.b16 %v518
    %v866 = vunpack.c.l.b16 %v519
    %v867 = vunpack.c.h.b16 %v519
    %v868 = vunpack.c.l.b16 %v520
    %v869 = vunpack.c.h.b16 %v520
    %v870 = vunpack.c.l.b16 %v521
    %v871 = vunpack.c.h.b16 %v521
    %v872 = vunpack.c.l.b16 %v522
    %v873 = vunpack.c.h.b16 %v522
    %v874 = vunpack.c.l.b16 %v523
    %v875 = vunpack.c.h.b16 %v523
    %v876 = vunpack.c.l.b16 %v524
    %v877 = vunpack.c.h.b16 %v524
    %v878 = vunpack.c.l.b16 %v525
    %v879 = vunpack.c.h.b16 %v525
    %v880 = vunpack.c.l.b16 %v526
    %v881 = vunpack.c.h.b16 %v526
    %v882 = vunpack.c.l.b16 %v527
    %v883 = vunpack.c.h.b16 %v527
    %v884 = vunpack.c.l.b16 %v528
    %v885 = vunpack.c.h.b16 %v528
    %v886 = vunpack.c.l.b16 %v529
    %v887 = vunpack.c.h.b16 %v529
    %v888 = vunpack.c.l.b16 %v530
    %v889 = vunpack.c.h.b16 %v530
    %v890 = vunpack.c.l.b16 %v531
    %v891 = vunpack.c.h.b16 %v531
    %v892 = vunpack.c.l.b16 %v532
    %v893 = vunpack.c.h.b16 %v532
    %v894 = vunpack.c.l.b16 %v533
    %v895 = vunpack.c.h.b16 %v533
    %v896 = vunpack.c.l.b16 %v534
    %v897 = vunpack.c.h.b16 %v534
    %v898 = vunpack.c.l.b16 %v535
    %v899 = vunpack.c.h.b16 %v535
    %v900 = vunpack.c.l.b16 %v536
    %v901 = vunpack.c.h.b16 %v536
    %v902 = vunpack.c.l.b16 %v537
    %v903 = vunpack.c.h.b16 %v537
    %v904 = vunpack.c.l.b16 %v538
    %v905 = vunpack.c.h.b16 %v538
    %v906 = vunpack.c.l.b16 %v539
    %v907 = vunpack.c.h.b16 %v539
    %v908 = vunpack.c.l.b16 %v540
    %v909 = vunpack.c.h.b16 %v540
    %v910 = vunpack.c.l.b16 %v541
    %v911 = vunpack.c.h.b16 %v541
    %v912 = vunpack.c.l.b16 %v542
    %v913 = vunpack.c.h.b16 %v542
    %v914 = vunpack.c.l.b16 %v543
    %v915 = vunpack.c.h.b16 %v543
    %v916 = vunpack.c.l.b16 %v544
    %v917 = vunpack.c.h.b16 %v544
    %v918 = vunpack.c.l.b16 %v545
    %v919 = vunpack.c.h.b16 %v545
    %v920 = vunpack.c.l.b16 %v546
    %v921 = vunpack.c.h.b16 %v546
    %v922 = vunpack.c.l.b16 %v547
    %v923 = vunpack.c.h.b16 %v547
    %v924 = vunpack.c.l.b16 %v548
    %v925 = vunpack.c.h.b16 %v548
    %v926 = vunpack.c.l.b16 %v549
    %v927 = vunpack.c.h.b16 %v549
    %v928 = vunpack.c.l.b16 %v550
    %v929 = vunpack.c.h.b16 %v550
    %v930 = vunpack.c.l.b16 %v551
    %v931 = vunpack.c.h.b16 %v551
    %v932 = vunpack.c.l.b16 %v552
    %v933 = vunpack.c.h.b16 %v552
    %v934 = vunpack.c.l.b16 %v553
    %v935 = vunpack.c.h.b16 %v553
    %v936 = vunpack.c.l.b16 %v554
    %v937 = vunpack.c.h.b16 %v554
    %v938 = vunpack.c.l.b16 %v555
    %v939 = vunpack.c.h.b16 %v555
    %v940 = vpack.c.b16 %v688, %v684
    %v941 = vpack.c.b16 %v689, %v685
    %v942 = vpack.c.b16 %v690, %v686
    %v943 = vpack.c.b16 %v691, %v687
    %v944 = vpack.c.b16 %v696, %v692
    %v945 = vpack.c.b16 %v697, %v693
    %v946 = vpack.c.b16 %v698, %v694
    %v947 = vpack.c.b16 %v699, %v695
    %v948 = vpack.c.b16 %v704, %v700
    %v949 = vpack.c.b16 %v705, %v701
    %v950 = vpack.c.b16 %v706, %v702
    %v951 = vpack.c.b16 %v707, %v703
    %v952 = vpack.c.b16 %v712, %v708
    %v953 = vpack.c.b16 %v713, %v709
    %v954 = vpack.c.b16 %v714, %v710
    %v955 = vpack.c.b16 %v715, %v711
    %v956 = vpack.c.b16 %v720, %v716
    %v957 = vpack.c.b16 %v721, %v717
    %v958 = vpack.c.b16 %v722, %v718
    %v959 = vpack.c.b16 %v723, %v719
    %v960 = vpack.c.b16 %v728, %v724
    %v961 = vpack.c.b16 %v729, %v725
    %v962 = vpack.c.b16 %v730, %v726
    %v963 = vpack.c.b16 %v731, %v727
    %v964 = vpack.c.b16 %v736, %v732
    %v965 = vpack.c.b16 %v737, %v733
    %v966 = vpack.c.b16 %v738, %v734
    %v967 = vpack.c.b16 %v739, %v735
    %v968 = vpack.c.b16 %v744, %v740
    %v969 = vpack.c.b16 %v745, %v741
    %v970 = vpack.c.b16 %v746, %v742
    %v971 = vpack.c.b16 %v747, %v743
    %v972 = vpack.c.b16 %v752, %v748
    %v973 = vpack.c.b16 %v753, %v749
    %v974 = vpack.c.b16 %v754, %v750
    %v975 = vpack.c.b16 %v755, %v751
    %v976 = vpack.c.b16 %v760, %v756
    %v977 = vpack.c.b16 %v761, %v757
    %v978 = vpack.c.b16 %v762, %v758
    %v979 = vpack.c.b16 %v763, %v759
    %v980 = vpack.c.b16 %v768, %v764
    %v981 = vpack.c.b16 %v769, %v765
    %v982 = vpack.c.b16 %v770, %v766
    %v983 = vpack.c.b16 %v771, %v767
    %v984 = vpack.c.b16 %v776, %v772
    %v985 = vpack.c.b16 %v777, %v773
    %v986 = vpack.c.b16 %v778, %v774
    %v987 = vpack.c.b16 %v779, %v775
    %v988 = vpack.c.b16 %v784, %v780
    %v989 = vpack.c.b16 %v785, %v781
    %v990 = vpack.c.b16 %v786, %v782
    %v991 = vpack.c.b16 %v787, %v783
    %v992 = vpack.c.b16 %v792, %v788
    %v993 = vpack.c.b16 %v793, %v789
    %v994 = vpack.c.b16 %v794, %v790
    %v995 = vpack.c.b16 %v795, %v791
    %v996 = vpack.c.b16 %v800, %v796
    %v997 = vpack.c.b16 %v801, %v797
    %v998 = vpack.c.b16 %v802, %v798
    %v999 = vpack.c.b16 %v803, %v799
    %v1000 = vpack.c.b16 %v808, %v804
    %v1001 = vpack.c.b16 %v809, %v805
    %v1002 = vpack.c.b16 %v810, %v806
    %v1003 = vpack.c.b16 %v811, %v807
    %v1004 = vpack.c.b16 %v816, %v812
    %v1005 = vpack.c.b16 %v817, %v813
    %v1006 = vpack.c.b16 %v818, %v814
    %v1007 = vpack.c.b16 %v819, %v815
    %v1008 = vpack.c.b16 %v824, %v820
    %v1009 = vpack.c.b16 %v825, %v821
    %v1010 = vpack.c.b16 %v826, %v822
    %v1011 = vpack.c.b16 %v827, %v823
    %v1012 = vpack.c.b16 %v832, %v828
    %v1013 = vpack.c.b16 %v833, %v829
    %v1014 = vpack.c.b16 %v834, %v830
    %v1015 = vpack.c.b16 %v835, %v831
    %v1016 = vpack.c.b16 %v840, %v836
    %v1017 = vpack.c.b16 %v841, %v837
    %v1018 = vpack.c.b16 %v842, %v838
    %v1019 = vpack.c.b16 %v843, %v839
    %v1020 = vpack.c.b16 %v848, %v844
    %v1021 = vpack.c.b16 %v849, %v845
    %v1022 = vpack.c.b16 %v850, %v846
    %v1023 = vpack.c.b16 %v851, %v847
    %v1024 = vpack.c.b16 %v856, %v852
    %v1025 = vpack.c.b16 %v857, %v853
    %v1026 = vpack.c.b16 %v858, %v854
    %v1027 = vpack.c.b16 %v859, %v855
    %v1028 = vpack.c.b16 %v864, %v860
    %v1029 = vpack.c.b16 %v865, %v861
    %v1030 = vpack.c.b16 %v866, %v862
    %v1031 = vpack.c.b16 %v867, %v863
    %v1032 = vpack.c.b16 %v872, %v868
    %v1033 = vpack.c.b16 %v873, %v869
    %v1034 = vpack.c.b16 %v874, %v870
    %v1035 = vpack.c.b16 %v875, %v871
    %v1036 = vpack.c.b16 %v880, %v876
    %v1037 = vpack.c.b16 %v881, %v877
    %v1038 = vpack.c.b16 %v882, %v878
    %v1039 = vpack.c.b16 %v883, %v879
    %v1040 = vpack.c.b16 %v888, %v884
    %v1041 = vpack.c.b16 %v889, %v885
    %v1042 = vpack.c.b16 %v890, %v886
    %v1043 = vpack.c.b16 %v891, %v887
    %v1044 = vpack.c.b16 %v896, %v892
    %v1045 = vpack.c.b16 %v897, %v893
    %v1046 = vpack.c.b16 %v898, %v894
    %v1047 = vpack.c.b16 %v899, %v895
    %v1048 = vpack.c.b16 %v904, %v900
    %v1049 = vpack.c.b16 %v905, %v901
    %v1050 = vpack.c.b16 %v906, %v902
    %v1051 = vpack.c.b16 %v907, %v903
    %v1052 = vpack.c.b16 %v912, %v908
    %v1053 = vpack.c.b16 %v913, %v909
    %v1054 = vpack.c.b16 %v914, %v910
    %v1055 = vpack.c.b16 %v915, %v911
    %v1056 = vpack.c.b16 %v920, %v916
    %v1057 = vpack.c.b16 %v921, %v917
    %v1058 = vpack.c.b16 %v922, %v918
    %v1059 = vpack.c.b16 %v923, %v919
    %v1060 = vpack.c.b16 %v928, %v924
    %v1061 = vpack.c.b16 %v929, %v925
    %v1062 = vpack.c.b16 %v930, %v926
    %v1063 = vpack.c.b16 %v931, %v927
    %v1064 = vpack.c.b16 %v936, %v932
    %v1065 = vpack.c.b16 %v937, %v933
    %v1066 = vpack.c.b16 %v938, %v934
    %v1067 = vpack.c.b16 %v939, %v935
    %1196 = vmatprep.subr.bf16.mxu0 %v941
    %1197 = vmatpush1.bf16.msra.mxu0 %v940
    %1198 = vmatprep.subr.bf16.mxu0 %v945
    %1199 = vmatpush1.bf16.msra.mxu0 %v944
    %1200 = vmatprep.subr.bf16.mxu0 %v949
    %1201 = vmatpush1.bf16.msra.mxu0 %v948
    %1202 = vmatprep.subr.bf16.mxu0 %v953
    %1203 = vmatpush1.bf16.msra.mxu0 %v952
    %1204 = vmatprep.subr.bf16.mxu0 %v957
    %1205 = vmatpush1.bf16.msra.mxu0 %v956
    %1206 = vmatprep.subr.bf16.mxu0 %v961
    %1207 = vmatpush1.bf16.msra.mxu0 %v960
    %1208 = vmatprep.subr.bf16.mxu0 %v965
    %1209 = vmatpush1.bf16.msra.mxu0 %v964
    %1210 = vmatprep.subr.bf16.mxu0 %v969
    %1211 = vmatpush1.bf16.msra.mxu0 %v968
    %1212 = vmatprep.subr.bf16.mxu0 %v973
    %1213 = vmatpush1.bf16.msra.mxu0 %v972
    %1214 = vmatprep.subr.bf16.mxu0 %v977
    %1215 = vmatpush1.bf16.msra.mxu0 %v976
    %1216 = vmatprep.subr.bf16.mxu0 %v981
    %1217 = vmatpush1.bf16.msra.mxu0 %v980
    %1218 = vmatprep.subr.bf16.mxu0 %v985
    %1219 = vmatpush1.bf16.msra.mxu0 %v984
    %1220 = vmatprep.subr.bf16.mxu0 %v989
    %1221 = vmatpush1.bf16.msra.mxu0 %v988
    %1222 = vmatprep.subr.bf16.mxu0 %v993
    %1223 = vmatpush1.bf16.msra.mxu0 %v992
    %1224 = vmatprep.subr.bf16.mxu0 %v997
    %1225 = vmatpush1.bf16.msra.mxu0 %v996
    %1226 = vmatprep.subr.bf16.mxu0 %v1001
    %1227 = vmatpush1.bf16.msra.mxu0 %v1000
    %1228 = vmatprep.mubr.bf16.mxu0 %v425
    %1229 = vmatmul.mubr.bf16.gmra.mrb[0].mxu0 %v424
    %v1230 = vpop.f32.mrb[0].mxu0
    %v1231 = vadd.f32 0.0, %v1230
    %v1232 = vpop.f32.mrb[0].mxu0
    %v1233 = vadd.f32 0.0, %v1232
    %v1234 = vpop.f32.mrb[0].mxu0
    %v1235 = vpop.f32.mrb[0].mxu0
    %1236 = vdwg.mxu0
    %1237 = vmatprep.subr.bf16.mxu0 %v1005
    %1238 = vmatpush1.bf16.msra.mxu0 %v1004
    %1239 = vmatprep.subr.bf16.mxu0 %v1009
    %1240 = vmatpush1.bf16.msra.mxu0 %v1008
    %1241 = vmatprep.subr.bf16.mxu0 %v1013
    %1242 = vmatpush1.bf16.msra.mxu0 %v1012
    %1243 = vmatprep.subr.bf16.mxu0 %v1017
    %1244 = vmatpush1.bf16.msra.mxu0 %v1016
    %1245 = vmatprep.subr.bf16.mxu0 %v1021
    %1246 = vmatpush1.bf16.msra.mxu0 %v1020
    %1247 = vmatprep.subr.bf16.mxu0 %v1025
    %1248 = vmatpush1.bf16.msra.mxu0 %v1024
    %1249 = vmatprep.subr.bf16.mxu0 %v1029
    %1250 = vmatpush1.bf16.msra.mxu0 %v1028
    %1251 = vmatprep.subr.bf16.mxu0 %v1033
    %1252 = vmatpush1.bf16.msra.mxu0 %v1032
    %1253 = vmatprep.subr.bf16.mxu0 %v1037
    %1254 = vmatpush1.bf16.msra.mxu0 %v1036
    %1255 = vmatprep.subr.bf16.mxu0 %v1041
    %1256 = vmatpush1.bf16.msra.mxu0 %v1040
    %1257 = vmatprep.subr.bf16.mxu0 %v1045
    %1258 = vmatpush1.bf16.msra.mxu0 %v1044
    %1259 = vmatprep.subr.bf16.mxu0 %v1049
    %1260 = vmatpush1.bf16.msra.mxu0 %v1048
    %1261 = vmatprep.subr.bf16.mxu0 %v1053
    %1262 = vmatpush1.bf16.msra.mxu0 %v1052
    %1263 = vmatprep.subr.bf16.mxu0 %v1057
    %1264 = vmatpush1.bf16.msra.mxu0 %v1056
    %1265 = vmatprep.subr.bf16.mxu0 %v1061
    %1266 = vmatpush1.bf16.msra.mxu0 %v1060
    %1267 = vmatprep.subr.bf16.mxu0 %v1065
    %1268 = vmatpush1.bf16.msra.mxu0 %v1064
    %1269 = vmatprep.mubr.bf16.mxu0 %v427
    %1270 = vmatmul.mubr.bf16.gmra.mrb[0].mxu0 %v426
    %v1271 = vpop.f32.mrb[0].mxu0
    %v1272 = vadd.f32 %v1231, %v1271
    %v1273 = vpop.f32.mrb[0].mxu0
    %v1274 = vadd.f32 %v1233, %v1273
    %v1275 = vpop.f32.mrb[0].mxu0
    %v1276 = vpop.f32.mrb[0].mxu0
    %1277 = vdwg.mxu0
    %1278 = vmatprep.subr.bf16.mxu0 %v943
    %1279 = vmatpush1.bf16.msra.mxu0 %v942
    %1280 = vmatprep.subr.bf16.mxu0 %v947
    %1281 = vmatpush1.bf16.msra.mxu0 %v946
    %1282 = vmatprep.subr.bf16.mxu0 %v951
    %1283 = vmatpush1.bf16.msra.mxu0 %v950
    %1284 = vmatprep.subr.bf16.mxu0 %v955
    %1285 = vmatpush1.bf16.msra.mxu0 %v954
    %1286 = vmatprep.subr.bf16.mxu0 %v959
    %1287 = vmatpush1.bf16.msra.mxu0 %v958
    %1288 = vmatprep.subr.bf16.mxu0 %v963
    %1289 = vmatpush1.bf16.msra.mxu0 %v962
    %1290 = vmatprep.subr.bf16.mxu0 %v967
    %1291 = vmatpush1.bf16.msra.mxu0 %v966
    %1292 = vmatprep.subr.bf16.mxu0 %v971
    %1293 = vmatpush1.bf16.msra.mxu0 %v970
    %1294 = vmatprep.subr.bf16.mxu0 %v975
    %1295 = vmatpush1.bf16.msra.mxu0 %v974
    %1296 = vmatprep.subr.bf16.mxu0 %v979
    %1297 = vmatpush1.bf16.msra.mxu0 %v978
    %1298 = vmatprep.subr.bf16.mxu0 %v983
    %1299 = vmatpush1.bf16.msra.mxu0 %v982
    %1300 = vmatprep.subr.bf16.mxu0 %v987
    %1301 = vmatpush1.bf16.msra.mxu0 %v986
    %1302 = vmatprep.subr.bf16.mxu0 %v991
    %1303 = vmatpush1.bf16.msra.mxu0 %v990
    %1304 = vmatprep.subr.bf16.mxu0 %v995
    %1305 = vmatpush1.bf16.msra.mxu0 %v994
    %1306 = vmatprep.subr.bf16.mxu0 %v999
    %1307 = vmatpush1.bf16.msra.mxu0 %v998
    %1308 = vmatprep.subr.bf16.mxu0 %v1003
    %1309 = vmatpush1.bf16.msra.mxu0 %v1002
    %1310 = vmatprep.mubr.bf16.mxu0 %v425
    %1311 = vmatmul.mubr.bf16.gmra.mrb[0].mxu0 %v424
    %v1312 = vpop.f32.mrb[0].mxu0
    %v1313 = vadd.f32 0.0, %v1312
    %v1314 = vpop.f32.mrb[0].mxu0
    %v1315 = vadd.f32 0.0, %v1314
    %v1316 = vpop.f32.mrb[0].mxu0
    %v1317 = vpop.f32.mrb[0].mxu0
    %1318 = vdwg.mxu0
    %1319 = vmatprep.subr.bf16.mxu0 %v1007
    %1320 = vmatpush1.bf16.msra.mxu0 %v1006
    %1321 = vmatprep.subr.bf16.mxu0 %v1011
    %1322 = vmatpush1.bf16.msra.mxu0 %v1010
    %1323 = vmatprep.subr.bf16.mxu0 %v1015
    %1324 = vmatpush1.bf16.msra.mxu0 %v1014
    %1325 = vmatprep.subr.bf16.mxu0 %v1019
    %1326 = vmatpush1.bf16.msra.mxu0 %v1018
    %1327 = vmatprep.subr.bf16.mxu0 %v1023
    %1328 = vmatpush1.bf16.msra.mxu0 %v1022
    %1329 = vmatprep.subr.bf16.mxu0 %v1027
    %1330 = vmatpush1.bf16.msra.mxu0 %v1026
    %1331 = vmatprep.subr.bf16.mxu0 %v1031
    %1332 = vmatpush1.bf16.msra.mxu0 %v1030
    %1333 = vmatprep.subr.bf16.mxu0 %v1035
    %1334 = vmatpush1.bf16.msra.mxu0 %v1034
    %1335 = vmatprep.subr.bf16.mxu0 %v1039
    %1336 = vmatpush1.bf16.msra.mxu0 %v1038
    %1337 = vmatprep.subr.bf16.mxu0 %v1043
    %1338 = vmatpush1.bf16.msra.mxu0 %v1042
    %1339 = vmatprep.subr.bf16.mxu0 %v1047
    %1340 = vmatpush1.bf16.msra.mxu0 %v1046
    %1341 = vmatprep.subr.bf16.mxu0 %v1051
    %1342 = vmatpush1.bf16.msra.mxu0 %v1050
    %1343 = vmatprep.subr.bf16.mxu0 %v1055
    %1344 = vmatpush1.bf16.msra.mxu0 %v1054
    %1345 = vmatprep.subr.bf16.mxu0 %v1059
    %1346 = vmatpush1.bf16.msra.mxu0 %v1058
    %1347 = vmatprep.subr.bf16.mxu0 %v1063
    %1348 = vmatpush1.bf16.msra.mxu0 %v1062
    %1349 = vmatprep.subr.bf16.mxu0 %v1067
    %1350 = vmatpush1.bf16.msra.mxu0 %v1066
    %1351 = vmatprep.mubr.bf16.mxu0 %v427
    %1352 = vmatmul.mubr.bf16.gmra.mrb[0].mxu0 %v426
    %v1353 = vpop.f32.mrb[0].mxu0
    %v1354 = vadd.f32 %v1313, %v1353
    %v1355 = vpop.f32.mrb[0].mxu0
    %v1356 = vadd.f32 %v1315, %v1355
    %v1357 = vpop.f32.mrb[0].mxu0
    %v1358 = vpop.f32.mrb[0].mxu0
    %1359 = vdwg.mxu0
    %v1360 = vpack.c.bf16 %v1272, %v1272
    %v1361 = vpack.c.bf16 %v1274, %v1274
    %v1362 = vpack.c.bf16 %v1354, %v1354
    %v1363 = vpack.c.bf16 %v1356, %v1356
    %v1364 = vld [vmem:[%s4] sm:$0xf]
    %v1366 = vlaneseq
    %v1367 = vshrl.u32 %v1366, 7
    %v1368 = vsub.s32 0, %v1367
    %v1369 = vrot.slane %v1364, %v1368
    %v1370 = vlaneseq
    %v1371 = vshrl.u32 %v1370, 7
    %v1372 = vsub.s32 1, %v1371
    %v1373 = vrot.slane %v1364, %v1372
    %v1374 = vlaneseq
    %v1375 = vshrl.u32 %v1374, 7
    %v1376 = vsub.s32 2, %v1375
    %v1377 = vrot.slane %v1364, %v1376
    %v1378 = vlaneseq
    %v1379 = vshrl.u32 %v1378, 7
    %v1380 = vsub.s32 3, %v1379
    %v1381 = vrot.slane %v1364, %v1380
    %v1386 = vpack.c.bf16 %v1369, %v1369
    %v1387 = vpack.c.bf16 %v1373, %v1373
    %v1388 = vpack.c.bf16 %v1377, %v1377
    %v1389 = vpack.c.bf16 %v1381, %v1381
    %v1391 = vpack.i.b16 %v1386, %v1386
    %v1393 = vlaneseq
    %v1394 = vshrl.u32 %v1393, 7
    %v1395 = vsub.s32 0, %v1394
    %v1396 = vrot.slane %v1391, %v1395
    %v1398 = vpack.i.b16 %v1387, %v1387
    %v1400 = vlaneseq
    %v1401 = vshrl.u32 %v1400, 7
    %v1402 = vsub.s32 0, %v1401
    %v1403 = vrot.slane %v1398, %v1402
    %v1405 = vpack.i.b16 %v1388, %v1388
    %v1407 = vlaneseq
    %v1408 = vshrl.u32 %v1407, 7
    %v1409 = vsub.s32 0, %v1408
    %v1410 = vrot.slane %v1405, %v1409
    %v1412 = vpack.i.b16 %v1389, %v1389
    %v1414 = vlaneseq
    %v1415 = vshrl.u32 %v1414, 7
    %v1416 = vsub.s32 0, %v1415
    %v1417 = vrot.slane %v1412, %v1416
    %v1418 = vadd.bf16 %v1360, %v1396
    %v1419 = vadd.bf16 %v1361, %v1403
    %v1420 = vadd.bf16 %v1362, %v1410
    %v1421 = vadd.bf16 %v1363, %v1417
    %v1422 = vmax.bf16 %v1418, 0
    %v1423 = vmax.bf16 %v1419, 0
    %v1424 = vmax.bf16 %v1420, 0
    %v1425 = vmax.bf16 %v1421, 0
    %v1426 = vld [vmem:[#allocation9] sm:$0xff]
    %v1427 = vld [vmem:[#allocation9 + $0x8] sm:$0xff]
    %v1428 = vld [vmem:[#allocation9 + $0x10] sm:$0xff]
    %v1429 = vld [vmem:[#allocation9 + $0x18] sm:$0xff]
    %v1430 = vld [vmem:[#allocation9 + $0x20] sm:$0xff]
    %v1431 = vld [vmem:[#allocation9 + $0x28] sm:$0xff]
    %v1432 = vld [vmem:[#allocation9 + $0x30] sm:$0xff]
    %v1433 = vld [vmem:[#allocation9 + $0x38] sm:$0xff]
    %v1434 = vld [vmem:[#allocation9 + $0x40] sm:$0xff]
    %v1435 = vld [vmem:[#allocation9 + $0x48] sm:$0xff]
    %v1436 = vld [vmem:[#allocation9 + $0x50] sm:$0xff]
    %v1437 = vld [vmem:[#allocation9 + $0x58] sm:$0xff]
    %v1438 = vld [vmem:[#allocation9 + $0x60] sm:$0xff]
    %v1439 = vld [vmem:[#allocation9 + $0x68] sm:$0xff]
    %v1440 = vld [vmem:[#allocation9 + $0x70] sm:$0xff]
    %v1441 = vld [vmem:[#allocation9 + $0x78] sm:$0xff]
    %v1442 = vld [vmem:[#allocation9 + $0x80] sm:$0xff]
    %v1443 = vld [vmem:[#allocation9 + $0x88] sm:$0xff]
    %v1444 = vld [vmem:[#allocation9 + $0x90] sm:$0xff]
    %v1445 = vld [vmem:[#allocation9 + $0x98] sm:$0xff]
    %v1446 = vld [vmem:[#allocation9 + $0xa0] sm:$0xff]
    %v1447 = vld [vmem:[#allocation9 + $0xa8] sm:$0xff]
    %v1448 = vld [vmem:[#allocation9 + $0xb0] sm:$0xff]
    %v1449 = vld [vmem:[#allocation9 + $0xb8] sm:$0xff]
    %v1450 = vld [vmem:[#allocation9 + $0xc0] sm:$0xff]
    %v1451 = vld [vmem:[#allocation9 + $0xc8] sm:$0xff]
    %v1452 = vld [vmem:[#allocation9 + $0xd0] sm:$0xff]
    %v1453 = vld [vmem:[#allocation9 + $0xd8] sm:$0xff]
    %v1454 = vld [vmem:[#allocation9 + $0xe0] sm:$0xff]
    %v1455 = vld [vmem:[#allocation9 + $0xe8] sm:$0xff]
    %v1456 = vld [vmem:[#allocation9 + $0xf0] sm:$0xff]
    %v1457 = vld [vmem:[#allocation9 + $0xf8] sm:$0xff]
    %v1458 = vld [vmem:[#allocation9 + $0x100] sm:$0xff]
    %v1459 = vld [vmem:[#allocation9 + $0x108] sm:$0xff]
    %v1460 = vld [vmem:[#allocation9 + $0x110] sm:$0xff]
    %v1461 = vld [vmem:[#allocation9 + $0x118] sm:$0xff]
    %v1462 = vld [vmem:[#allocation9 + $0x120] sm:$0xff]
    %v1463 = vld [vmem:[#allocation9 + $0x128] sm:$0xff]
    %v1464 = vld [vmem:[#allocation9 + $0x130] sm:$0xff]
    %v1465 = vld [vmem:[#allocation9 + $0x138] sm:$0xff]
    %v1466 = vld [vmem:[#allocation9 + $0x140] sm:$0xff]
    %v1467 = vld [vmem:[#allocation9 + $0x148] sm:$0xff]
    %v1468 = vld [vmem:[#allocation9 + $0x150] sm:$0xff]
    %v1469 = vld [vmem:[#allocation9 + $0x158] sm:$0xff]
    %v1470 = vld [vmem:[#allocation9 + $0x160] sm:$0xff]
    %v1471 = vld [vmem:[#allocation9 + $0x168] sm:$0xff]
    %v1472 = vld [vmem:[#allocation9 + $0x170] sm:$0xff]
    %v1473 = vld [vmem:[#allocation9 + $0x178] sm:$0xff]
    %v1474 = vld [vmem:[#allocation9 + $0x180] sm:$0xff]
    %v1475 = vld [vmem:[#allocation9 + $0x188] sm:$0xff]
    %v1476 = vld [vmem:[#allocation9 + $0x190] sm:$0xff]
    %v1477 = vld [vmem:[#allocation9 + $0x198] sm:$0xff]
    %v1478 = vld [vmem:[#allocation9 + $0x1a0] sm:$0xff]
    %v1479 = vld [vmem:[#allocation9 + $0x1a8] sm:$0xff]
    %v1480 = vld [vmem:[#allocation9 + $0x1b0] sm:$0xff]
    %v1481 = vld [vmem:[#allocation9 + $0x1b8] sm:$0xff]
    %v1482 = vld [vmem:[#allocation9 + $0x1c0] sm:$0xff]
    %v1483 = vld [vmem:[#allocation9 + $0x1c8] sm:$0xff]
    %v1484 = vld [vmem:[#allocation9 + $0x1d0] sm:$0xff]
    %v1485 = vld [vmem:[#allocation9 + $0x1d8] sm:$0xff]
    %v1486 = vld [vmem:[#allocation9 + $0x1e0] sm:$0xff]
    %v1487 = vld [vmem:[#allocation9 + $0x1e8] sm:$0xff]
    %v1488 = vld [vmem:[#allocation9 + $0x1f0] sm:$0xff]
    %v1489 = vld [vmem:[#allocation9 + $0x1f8] sm:$0xff]
    %v1490 = vld [vmem:[%s6] sm:$0x3]
    %v1492 = vlaneseq
    %v1493 = vshrl.u32 %v1492, 7
    %v1494 = vsub.s32 0, %v1493
    %v1495 = vrot.slane %v1490, %v1494
    %v1496 = vlaneseq
    %v1497 = vshrl.u32 %v1496, 7
    %v1498 = vsub.s32 1, %v1497
    %v1499 = vrot.slane %v1490, %v1498
    %v1566 = vunpack.c.l.b16 %v1426
    %v1567 = vunpack.c.h.b16 %v1426
    %v1568 = vunpack.c.l.b16 %v1427
    %v1569 = vunpack.c.h.b16 %v1427
    %v1570 = vunpack.c.l.b16 %v1428
    %v1571 = vunpack.c.h.b16 %v1428
    %v1572 = vunpack.c.l.b16 %v1429
    %v1573 = vunpack.c.h.b16 %v1429
    %v1574 = vunpack.c.l.b16 %v1430
    %v1575 = vunpack.c.h.b16 %v1430
    %v1576 = vunpack.c.l.b16 %v1431
    %v1577 = vunpack.c.h.b16 %v1431
    %v1578 = vunpack.c.l.b16 %v1432
    %v1579 = vunpack.c.h.b16 %v1432
    %v1580 = vunpack.c.l.b16 %v1433
    %v1581 = vunpack.c.h.b16 %v1433
    %v1582 = vunpack.c.l.b16 %v1434
    %v1583 = vunpack.c.h.b16 %v1434
    %v1584 = vunpack.c.l.b16 %v1435
    %v1585 = vunpack.c.h.b16 %v1435
    %v1586 = vunpack.c.l.b16 %v1436
    %v1587 = vunpack.c.h.b16 %v1436
    %v1588 = vunpack.c.l.b16 %v1437
    %v1589 = vunpack.c.h.b16 %v1437
    %v1590 = vunpack.c.l.b16 %v1438
    %v1591 = vunpack.c.h.b16 %v1438
    %v1592 = vunpack.c.l.b16 %v1439
    %v1593 = vunpack.c.h.b16 %v1439
    %v1594 = vunpack.c.l.b16 %v1440
    %v1595 = vunpack.c.h.b16 %v1440
    %v1596 = vunpack.c.l.b16 %v1441
    %v1597 = vunpack.c.h.b16 %v1441
    %v1598 = vunpack.c.l.b16 %v1442
    %v1599 = vunpack.c.h.b16 %v1442
    %v1600 = vunpack.c.l.b16 %v1443
    %v1601 = vunpack.c.h.b16 %v1443
    %v1602 = vunpack.c.l.b16 %v1444
    %v1603 = vunpack.c.h.b16 %v1444
    %v1604 = vunpack.c.l.b16 %v1445
    %v1605 = vunpack.c.h.b16 %v1445
    %v1606 = vunpack.c.l.b16 %v1446
    %v1607 = vunpack.c.h.b16 %v1446
    %v1608 = vunpack.c.l.b16 %v1447
    %v1609 = vunpack.c.h.b16 %v1447
    %v1610 = vunpack.c.l.b16 %v1448
    %v1611 = vunpack.c.h.b16 %v1448
    %v1612 = vunpack.c.l.b16 %v1449
    %v1613 = vunpack.c.h.b16 %v1449
    %v1614 = vunpack.c.l.b16 %v1450
    %v1615 = vunpack.c.h.b16 %v1450
    %v1616 = vunpack.c.l.b16 %v1451
    %v1617 = vunpack.c.h.b16 %v1451
    %v1618 = vunpack.c.l.b16 %v1452
    %v1619 = vunpack.c.h.b16 %v1452
    %v1620 = vunpack.c.l.b16 %v1453
    %v1621 = vunpack.c.h.b16 %v1453
    %v1622 = vunpack.c.l.b16 %v1454
    %v1623 = vunpack.c.h.b16 %v1454
    %v1624 = vunpack.c.l.b16 %v1455
    %v1625 = vunpack.c.h.b16 %v1455
    %v1626 = vunpack.c.l.b16 %v1456
    %v1627 = vunpack.c.h.b16 %v1456
    %v1628 = vunpack.c.l.b16 %v1457
    %v1629 = vunpack.c.h.b16 %v1457
    %v1630 = vunpack.c.l.b16 %v1458
    %v1631 = vunpack.c.h.b16 %v1458
    %v1632 = vunpack.c.l.b16 %v1459
    %v1633 = vunpack.c.h.b16 %v1459
    %v1634 = vunpack.c.l.b16 %v1460
    %v1635 = vunpack.c.h.b16 %v1460
    %v1636 = vunpack.c.l.b16 %v1461
    %v1637 = vunpack.c.h.b16 %v1461
    %v1638 = vunpack.c.l.b16 %v1462
    %v1639 = vunpack.c.h.b16 %v1462
    %v1640 = vunpack.c.l.b16 %v1463
    %v1641 = vunpack.c.h.b16 %v1463
    %v1642 = vunpack.c.l.b16 %v1464
    %v1643 = vunpack.c.h.b16 %v1464
    %v1644 = vunpack.c.l.b16 %v1465
    %v1645 = vunpack.c.h.b16 %v1465
    %v1646 = vunpack.c.l.b16 %v1466
    %v1647 = vunpack.c.h.b16 %v1466
    %v1648 = vunpack.c.l.b16 %v1467
    %v1649 = vunpack.c.h.b16 %v1467
    %v1650 = vunpack.c.l.b16 %v1468
    %v1651 = vunpack.c.h.b16 %v1468
    %v1652 = vunpack.c.l.b16 %v1469
    %v1653 = vunpack.c.h.b16 %v1469
    %v1654 = vunpack.c.l.b16 %v1470
    %v1655 = vunpack.c.h.b16 %v1470
    %v1656 = vunpack.c.l.b16 %v1471
    %v1657 = vunpack.c.h.b16 %v1471
    %v1658 = vunpack.c.l.b16 %v1472
    %v1659 = vunpack.c.h.b16 %v1472
    %v1660 = vunpack.c.l.b16 %v1473
    %v1661 = vunpack.c.h.b16 %v1473
    %v1662 = vunpack.c.l.b16 %v1474
    %v1663 = vunpack.c.h.b16 %v1474
    %v1664 = vunpack.c.l.b16 %v1475
    %v1665 = vunpack.c.h.b16 %v1475
    %v1666 = vunpack.c.l.b16 %v1476
    %v1667 = vunpack.c.h.b16 %v1476
    %v1668 = vunpack.c.l.b16 %v1477
    %v1669 = vunpack.c.h.b16 %v1477
    %v1670 = vunpack.c.l.b16 %v1478
    %v1671 = vunpack.c.h.b16 %v1478
    %v1672 = vunpack.c.l.b16 %v1479
    %v1673 = vunpack.c.h.b16 %v1479
    %v1674 = vunpack.c.l.b16 %v1480
    %v1675 = vunpack.c.h.b16 %v1480
    %v1676 = vunpack.c.l.b16 %v1481
    %v1677 = vunpack.c.h.b16 %v1481
    %v1678 = vunpack.c.l.b16 %v1482
    %v1679 = vunpack.c.h.b16 %v1482
    %v1680 = vunpack.c.l.b16 %v1483
    %v1681 = vunpack.c.h.b16 %v1483
    %v1682 = vunpack.c.l.b16 %v1484
    %v1683 = vunpack.c.h.b16 %v1484
    %v1684 = vunpack.c.l.b16 %v1485
    %v1685 = vunpack.c.h.b16 %v1485
    %v1686 = vunpack.c.l.b16 %v1486
    %v1687 = vunpack.c.h.b16 %v1486
    %v1688 = vunpack.c.l.b16 %v1487
    %v1689 = vunpack.c.h.b16 %v1487
    %v1690 = vunpack.c.l.b16 %v1488
    %v1691 = vunpack.c.h.b16 %v1488
    %v1692 = vunpack.c.l.b16 %v1489
    %v1693 = vunpack.c.h.b16 %v1489
    %v1694 = vpack.c.b16 %v1568, %v1566
    %v1695 = vpack.c.b16 %v1569, %v1567
    %v1696 = vpack.c.b16 %v1572, %v1570
    %v1697 = vpack.c.b16 %v1573, %v1571
    %v1698 = vpack.c.b16 %v1576, %v1574
    %v1699 = vpack.c.b16 %v1577, %v1575
    %v1700 = vpack.c.b16 %v1580, %v1578
    %v1701 = vpack.c.b16 %v1581, %v1579
    %v1702 = vpack.c.b16 %v1584, %v1582
    %v1703 = vpack.c.b16 %v1585, %v1583
    %v1704 = vpack.c.b16 %v1588, %v1586
    %v1705 = vpack.c.b16 %v1589, %v1587
    %v1706 = vpack.c.b16 %v1592, %v1590
    %v1707 = vpack.c.b16 %v1593, %v1591
    %v1708 = vpack.c.b16 %v1596, %v1594
    %v1709 = vpack.c.b16 %v1597, %v1595
    %v1710 = vpack.c.b16 %v1600, %v1598
    %v1711 = vpack.c.b16 %v1601, %v1599
    %v1712 = vpack.c.b16 %v1604, %v1602
    %v1713 = vpack.c.b16 %v1605, %v1603
    %v1714 = vpack.c.b16 %v1608, %v1606
    %v1715 = vpack.c.b16 %v1609, %v1607
    %v1716 = vpack.c.b16 %v1612, %v1610
    %v1717 = vpack.c.b16 %v1613, %v1611
    %v1718 = vpack.c.b16 %v1616, %v1614
    %v1719 = vpack.c.b16 %v1617, %v1615
    %v1720 = vpack.c.b16 %v1620, %v1618
    %v1721 = vpack.c.b16 %v1621, %v1619
    %v1722 = vpack.c.b16 %v1624, %v1622
    %v1723 = vpack.c.b16 %v1625, %v1623
    %v1724 = vpack.c.b16 %v1628, %v1626
    %v1725 = vpack.c.b16 %v1629, %v1627
    %v1726 = vpack.c.b16 %v1632, %v1630
    %v1727 = vpack.c.b16 %v1633, %v1631
    %v1728 = vpack.c.b16 %v1636, %v1634
    %v1729 = vpack.c.b16 %v1637, %v1635
    %v1730 = vpack.c.b16 %v1640, %v1638
    %v1731 = vpack.c.b16 %v1641, %v1639
    %v1732 = vpack.c.b16 %v1644, %v1642
    %v1733 = vpack.c.b16 %v1645, %v1643
    %v1734 = vpack.c.b16 %v1648, %v1646
    %v1735 = vpack.c.b16 %v1649, %v1647
    %v1736 = vpack.c.b16 %v1652, %v1650
    %v1737 = vpack.c.b16 %v1653, %v1651
    %v1738 = vpack.c.b16 %v1656, %v1654
    %v1739 = vpack.c.b16 %v1657, %v1655
    %v1740 = vpack.c.b16 %v1660, %v1658
    %v1741 = vpack.c.b16 %v1661, %v1659
    %v1742 = vpack.c.b16 %v1664, %v1662
    %v1743 = vpack.c.b16 %v1665, %v1663
    %v1744 = vpack.c.b16 %v1668, %v1666
    %v1745 = vpack.c.b16 %v1669, %v1667
    %v1746 = vpack.c.b16 %v1672, %v1670
    %v1747 = vpack.c.b16 %v1673, %v1671
    %v1748 = vpack.c.b16 %v1676, %v1674
    %v1749 = vpack.c.b16 %v1677, %v1675
    %v1750 = vpack.c.b16 %v1680, %v1678
    %v1751 = vpack.c.b16 %v1681, %v1679
    %v1752 = vpack.c.b16 %v1684, %v1682
    %v1753 = vpack.c.b16 %v1685, %v1683
    %v1754 = vpack.c.b16 %v1688, %v1686
    %v1755 = vpack.c.b16 %v1689, %v1687
    %v1756 = vpack.c.b16 %v1692, %v1690
    %v1757 = vpack.c.b16 %v1693, %v1691
    %1822 = vmatprep.subr.bf16.mxu0 %v1695
    %1823 = vmatpush1.bf16.msra.mxu0 %v1694
    %1824 = vmatprep.subr.bf16.mxu0 %v1697
    %1825 = vmatpush1.bf16.msra.mxu0 %v1696
    %1826 = vmatprep.subr.bf16.mxu0 %v1699
    %1827 = vmatpush1.bf16.msra.mxu0 %v1698
    %1828 = vmatprep.subr.bf16.mxu0 %v1701
    %1829 = vmatpush1.bf16.msra.mxu0 %v1700
    %1830 = vmatprep.subr.bf16.mxu0 %v1703
    %1831 = vmatpush1.bf16.msra.mxu0 %v1702
    %1832 = vmatprep.subr.bf16.mxu0 %v1705
    %1833 = vmatpush1.bf16.msra.mxu0 %v1704
    %1834 = vmatprep.subr.bf16.mxu0 %v1707
    %1835 = vmatpush1.bf16.msra.mxu0 %v1706
    %1836 = vmatprep.subr.bf16.mxu0 %v1709
    %1837 = vmatpush1.bf16.msra.mxu0 %v1708
    %1838 = vmatprep.subr.bf16.mxu0 %v1711
    %1839 = vmatpush1.bf16.msra.mxu0 %v1710
    %1840 = vmatprep.subr.bf16.mxu0 %v1713
    %1841 = vmatpush1.bf16.msra.mxu0 %v1712
    %1842 = vmatprep.subr.bf16.mxu0 %v1715
    %1843 = vmatpush1.bf16.msra.mxu0 %v1714
    %1844 = vmatprep.subr.bf16.mxu0 %v1717
    %1845 = vmatpush1.bf16.msra.mxu0 %v1716
    %1846 = vmatprep.subr.bf16.mxu0 %v1719
    %1847 = vmatpush1.bf16.msra.mxu0 %v1718
    %1848 = vmatprep.subr.bf16.mxu0 %v1721
    %1849 = vmatpush1.bf16.msra.mxu0 %v1720
    %1850 = vmatprep.subr.bf16.mxu0 %v1723
    %1851 = vmatpush1.bf16.msra.mxu0 %v1722
    %1852 = vmatprep.subr.bf16.mxu0 %v1725
    %1853 = vmatpush1.bf16.msra.mxu0 %v1724
    %1854 = vmatprep.mubr.bf16.mxu0 %v1423
    %1855 = vmatmul.mubr.bf16.gmra.mrb[0].mxu0 %v1422
    %v1856 = vpop.f32.mrb[0].mxu0
    %v1857 = vadd.f32 %v1495, %v1856
    %v1858 = vpop.f32.mrb[0].mxu0
    %v1859 = vadd.f32 %v1499, %v1858
    %v1860 = vpop.f32.mrb[0].mxu0
    %v1861 = vpop.f32.mrb[0].mxu0
    %1862 = vdwg.mxu0
    %1863 = vmatprep.subr.bf16.mxu0 %v1727
    %1864 = vmatpush1.bf16.msra.mxu0 %v1726
    %1865 = vmatprep.subr.bf16.mxu0 %v1729
    %1866 = vmatpush1.bf16.msra.mxu0 %v1728
    %1867 = vmatprep.subr.bf16.mxu0 %v1731
    %1868 = vmatpush1.bf16.msra.mxu0 %v1730
    %1869 = vmatprep.subr.bf16.mxu0 %v1733
    %1870 = vmatpush1.bf16.msra.mxu0 %v1732
    %1871 = vmatprep.subr.bf16.mxu0 %v1735
    %1872 = vmatpush1.bf16.msra.mxu0 %v1734
    %1873 = vmatprep.subr.bf16.mxu0 %v1737
    %1874 = vmatpush1.bf16.msra.mxu0 %v1736
    %1875 = vmatprep.subr.bf16.mxu0 %v1739
    %1876 = vmatpush1.bf16.msra.mxu0 %v1738
    %1877 = vmatprep.subr.bf16.mxu0 %v1741
    %1878 = vmatpush1.bf16.msra.mxu0 %v1740
    %1879 = vmatprep.subr.bf16.mxu0 %v1743
    %1880 = vmatpush1.bf16.msra.mxu0 %v1742
    %1881 = vmatprep.subr.bf16.mxu0 %v1745
    %1882 = vmatpush1.bf16.msra.mxu0 %v1744
    %1883 = vmatprep.subr.bf16.mxu0 %v1747
    %1884 = vmatpush1.bf16.msra.mxu0 %v1746
    %1885 = vmatprep.subr.bf16.mxu0 %v1749
    %1886 = vmatpush1.bf16.msra.mxu0 %v1748
    %1887 = vmatprep.subr.bf16.mxu0 %v1751
    %1888 = vmatpush1.bf16.msra.mxu0 %v1750
    %1889 = vmatprep.subr.bf16.mxu0 %v1753
    %1890 = vmatpush1.bf16.msra.mxu0 %v1752
    %1891 = vmatprep.subr.bf16.mxu0 %v1755
    %1892 = vmatpush1.bf16.msra.mxu0 %v1754
    %1893 = vmatprep.subr.bf16.mxu0 %v1757
    %1894 = vmatpush1.bf16.msra.mxu0 %v1756
    %1895 = vmatprep.mubr.bf16.mxu0 %v1425
    %1896 = vmatmul.mubr.bf16.gmra.mrb[0].mxu0 %v1424
    %v1897 = vpop.f32.mrb[0].mxu0
    %v1898 = vadd.f32 %v1857, %v1897
    %v1899 = vpop.f32.mrb[0].mxu0
    %v1900 = vadd.f32 %v1859, %v1899
    %v1901 = vpop.f32.mrb[0].mxu0
    %v1902 = vpop.f32.mrb[0].mxu0
    %1903 = vdwg.mxu0
    %v1904 = vtanh.pop %v1898
    %v1905 = vtanh.pop %v1900
    %1906 = vst [vmem:[#allocation11] sm:$0xff] %v1904
    %1907 = vst [vmem:[#allocation11 + $0x8] sm:$0xff] %v1905
    // Predicated region
    $region46: #{tpu_custom_call.1} parent=1 // pred_check
      _
    $region47: #{tpu_custom_call.1} parent=1 // pred_check_branch
      %1909 = sbr.rel (0) target = $region49
    $region48: #{tpu_custom_call.1} parent=1 // pred_region
      %s1911 = ssub.s32 256, 256
      %1912 = vsyncadd [#allocation5], %s1911
      %s1914 = sshll.u32 [#allocation11], 4
      %s1915 = int_to_ptr.vmem [resolvable:$true] %s1914
      %1917 = dma.vmem_to_hbm [thread:$0]  %s1915, 256, %s7, [#allocation5]
    $region49: #{tpu_custom_call.1} parent=1 // pred_fallthru
      _
    // Predicated region
    $region50: #{tpu_custom_call.1} parent=1 // pred_check
      _
    $region51: #{tpu_custom_call.1} parent=1 // pred_check_branch
      %1919 = sbr.rel (0) target = $region53
    $region52: #{tpu_custom_call.1} parent=1 // pred_region
      %1920 = dma.done [#allocation5], 256
    $region53: #{tpu_custom_call.1} parent=1 // pred_fallthru
      _
    %1921 = vsyncpa [#allocation4], 1
    %1922 = vsyncpa [#allocation7], 1
    %1923 = vsyncpa [#allocation10], 1
    %1924 = vsyncpa [#allocation5], 1

</llo_original>
